<compile_context>
chip_gen: v5e
topology: v5e:2x2
jax: 0.10.0
libtpu: 0.0.40
codegen_flags: <defaults>
</compile_context>

<pallas_src>
import jax
import jax.numpy as jnp
from jax.experimental import pallas as pl
from jax.experimental.pallas import tpu as pltpu

HIDDEN = 32    # hidden_size
VOCAB = 50     # input_size (dictionary size) -- small synthetic vocab
GATE = 128     # per-gate lane padding (one vreg lane width); gates at lane offsets 0/128/256


def _encoder_seq_kernel(tok_ref, h0_ref, emb_ref, wih_ref, bih_ref,
                        whh_ref, bhh_ref, out_ref):
    """Whole-sequence GRU encoder in a single grid step.

    tok_ref : (T,)            int32 tokens, scalar-prefetched into SMEM
    h0_ref  : (1, GATE)       initial hidden state (gate-padded, f32)
    emb_ref : (VOCAB, 1, GATE) embedding table (row per token, lanes 0..H-1 used)
    wih_ref : (GATE, 3*GATE)  input-projection weights, f32
    bih_ref : (1, 3*GATE)     input-projection bias, f32
    whh_ref : (GATE, 3*GATE)  recurrent weights, bf16 (MXU), f32 accumulation
    bhh_ref : (1, 3*GATE)     recurrent bias, f32
    out_ref : (T, GATE)       per-step hidden states (== GRU outputs)
    """
    T = out_ref.shape[0]
    P = GATE

    h = h0_ref[...]                                  # (1, P) f32 carried in registers
    rows = []
    for t in range(T):                               # T is static; fully unrolled
        tok = tok_ref[t]                             # SMEM scalar read
        x = emb_ref[tok]                             # (1, P) dynamic row gather from VMEM
        # Input projection (independent of h; scheduler can overlap with recurrence).
        gi = jnp.dot(x, wih_ref[...],
                     preferred_element_type=jnp.float32) + bih_ref[...]
        # Recurrent projection: bf16 x bf16 on the MXU, f32 accumulate (critical path).
        gh = jnp.dot(h.astype(jnp.bfloat16), whh_ref[...],
                     preferred_element_type=jnp.float32) + bhh_ref[...]
        # Gate slices fall exactly on 128-lane vreg boundaries -> no XLU lane shuffles.
        r = jax.nn.sigmoid(gi[:, 0:P] + gh[:, 0:P])
        z = jax.nn.sigmoid(gi[:, P:2 * P] + gh[:, P:2 * P])
        n = jnp.tanh(gi[:, 2 * P:3 * P] + r * gh[:, 2 * P:3 * P])
        h = (1.0 - z) * n + z * h
        rows.append(h)

    # Single lane/sublane-dense store of all per-step hidden states.
    out_ref[...] = jnp.concatenate(rows, axis=0)


@jax.jit
def encoder_forward_seq(tokens, s0, params):
    """Run the encoder over a whole token sequence in ONE pallas_call.

    Equivalent to calling Encoder.forward(token_t, h_t) for t = 0..T-1.
    Returns (outputs (T, 1, H), h_n (1, 1, H)).
    """
    emb_pad, w_ih_pad, w_hh_pad, b_ih_pad, b_hh_pad = params
    H, P = HIDDEN, GATE
    T = tokens.shape[0]
    V = emb_pad.shape[0]

    h0 = jnp.zeros((1, P), jnp.float32).at[:, :H].set(
        s0.reshape(1, H).astype(jnp.float32))

    grid_spec = pltpu.PrefetchScalarGridSpec(
        num_scalar_prefetch=1,                      # tokens -> SMEM, fused gather
        grid=(1,),                                  # single grid step; loop lives in-kernel
        in_specs=[
            pl.BlockSpec((1, P), lambda i, tok: (0, 0)),           # h0
            pl.BlockSpec((V, 1, P), lambda i, tok: (0, 0, 0)),     # embedding table
            pl.BlockSpec((P, 3 * P), lambda i, tok: (0, 0)),       # W_ih^T padded (f32)
            pl.BlockSpec((1, 3 * P), lambda i, tok: (0, 0)),       # b_ih padded
            pl.BlockSpec((P, 3 * P), lambda i, tok: (0, 0)),       # W_hh^T padded (bf16)
            pl.BlockSpec((1, 3 * P), lambda i, tok: (0, 0)),       # b_hh padded
        ],
        out_specs=pl.BlockSpec((T, P), lambda i, tok: (0, 0)),     # all steps, one block
    )

    out_pad = pl.pallas_call(
        _encoder_seq_kernel,
        grid_spec=grid_spec,
        out_shape=jax.ShapeDtypeStruct((T, P), jnp.float32),
        compiler_params=pltpu.CompilerParams(
            dimension_semantics=("arbitrary",)),
    )(tokens.astype(jnp.int32), h0, emb_pad, w_ih_pad, b_ih_pad, w_hh_pad, b_hh_pad)

    outputs = out_pad[:, :H].reshape(T, 1, H)        # (seq, batch=1, H)
    h_n = out_pad[T - 1, :H].reshape(1, 1, H)        # final hidden state
    return outputs, h_n


def encoder_forward(token_id, s, params):
    """Exactly the original Encoder.forward(x, s) -> (output (1,1,H), h_n (1,1,H)).

    NOTE: for decode loops, prefer encoder_forward_seq over per-token calls
    (one fused pallas_call per sequence instead of one dispatch per token).
    """
    tokens = jnp.asarray(token_id, jnp.int32).reshape(1)
    outputs, h_n = encoder_forward_seq(tokens, s, params)
    return outputs, h_n


def init_hidden(hidden_size):
    # Encoder.__init_hidden__
    return jnp.zeros((1, 1, hidden_size), jnp.float32)


def pack_params(emb, w_ih, w_hh, b_ih, b_hh):
    """Convert PyTorch-layout weights (3H,H)/(3H,) to the gate-padded kernel layout.

    Each gate g in [r, z, n] lives at lanes [g*GATE : g*GATE+H]; padded lanes / rows
    are zero, so padded lanes of h remain harmless through the recurrence. The
    recurrent weight matrix is stored in bf16 (serial-path MXU latency); everything
    else stays f32.
    """
    H, P = HIDDEN, GATE
    V = emb.shape[0]
    emb_pad = jnp.zeros((V, 1, P), jnp.float32).at[:, 0, :H].set(
        emb.astype(jnp.float32))
    w_ih_pad = jnp.zeros((P, 3 * P), jnp.float32)
    w_hh_pad = jnp.zeros((P, 3 * P), jnp.float32)
    b_ih_pad = jnp.zeros((1, 3 * P), jnp.float32)
    b_hh_pad = jnp.zeros((1, 3 * P), jnp.float32)
    for g in range(3):
        w_ih_pad = w_ih_pad.at[:H, g * P:g * P + H].set(w_ih[g * H:(g + 1) * H, :].T)
        w_hh_pad = w_hh_pad.at[:H, g * P:g * P + H].set(w_hh[g * H:(g + 1) * H, :].T)
        b_ih_pad = b_ih_pad.at[:, g * P:g * P + H].set(b_ih[g * H:(g + 1) * H])
        b_hh_pad = b_hh_pad.at[:, g * P:g * P + H].set(b_hh[g * H:(g + 1) * H])
    return (emb_pad, w_ih_pad, w_hh_pad.astype(jnp.bfloat16), b_ih_pad, b_hh_pad)


# TODO(synk): a batched (B>1) variant with a leading "parallel" grid axis would let the
# second v7x TensorCore engage; the reference module is strictly batch=1 so it is omitted.

if __name__ == "__main__":
    H = HIDDEN
    key = jax.random.PRNGKey(0)
    k1, k2, k3, k4, k5, k6 = jax.random.split(key, 6)

    # Deterministic synthetic parameters (shapes match nn.Embedding / nn.GRU).
    emb = jax.random.normal(k1, (VOCAB, H), jnp.float32) * 0.1
    w_ih = jax.random.normal(k2, (3 * H, H), jnp.float32) * 0.1   # weight_ih_l0
    w_hh = jax.random.normal(k3, (3 * H, H), jnp.float32) * 0.1   # weight_hh_l0
    b_ih = jax.random.normal(k4, (3 * H,), jnp.float32) * 0.1
    b_hh = jax.random.normal(k5, (3 * H,), jnp.float32) * 0.1

    params = pack_params(emb, w_ih, w_hh, b_ih, b_hh)

    T = 8
    tokens = jax.random.randint(k6, (T,), 0, VOCAB, jnp.int32)
    s0 = init_hidden(H)                              # (1, 1, H) zeros

    # Fused-sequence path (one pallas_call for all T steps).
    outputs, h_n = encoder_forward_seq(tokens, s0, params)
    jax.block_until_ready((outputs, h_n))

    # Original single-step Encoder.forward signature.
    out1, h1 = encoder_forward(tokens[0], s0, params)
    jax.block_until_ready((out1, h1))

    # Pure-JAX f32 reference of torch.nn.GRU semantics, stepped in Python.
    def ref_step(h, tok):
        x = emb[tok].reshape(1, H)
        gi = x @ w_ih.T + b_ih
        gh = h @ w_hh.T + b_hh
        r = jax.nn.sigmoid(gi[:, :H] + gh[:, :H])
        z = jax.nn.sigmoid(gi[:, H:2 * H] + gh[:, H:2 * H])
        n = jnp.tanh(gi[:, 2 * H:] + r * gh[:, 2 * H:])
        return (1.0 - z) * n + z * h

    h = s0.reshape(1, H)
    refs = []
    for t in range(T):
        h = ref_step(h, tokens[t])
        refs.append(h)
    ref_out = jnp.stack(refs).reshape(T, 1, H)

    # Tolerance loosened vs the pure-f32 version: the recurrent matmul uses bf16
    # weights/activations (f32 accumulate), and the error compounds over T steps.
    ATOL = 1e-2
    assert jnp.allclose(outputs, ref_out, atol=ATOL), "sequence output mismatch"
    assert jnp.allclose(h_n, ref_out[-1].reshape(1, 1, H), atol=ATOL), "h_n mismatch"
    assert jnp.allclose(out1, ref_out[0:1], atol=ATOL), "single-step output mismatch"
    assert jnp.allclose(h1, ref_out[0].reshape(1, 1, H), atol=ATOL), "single-step h_n mismatch"
    print("KERNEL_OK")
</pallas_src>

<mosaic_0001>
module attributes {stable_mosaic.version = 11 : i64} {
  func.func @_encoder_seq_kernel(%arg0: i32, %arg1: memref<8xi32, #tpu.memory_space<smem>>, %arg2: memref<1x128xf32, #tpu.memory_space<vmem>>, %arg3: memref<50x1x128xf32, #tpu.memory_space<vmem>>, %arg4: memref<128x384xf32, #tpu.memory_space<vmem>>, %arg5: memref<1x384xf32, #tpu.memory_space<vmem>>, %arg6: memref<128x384xbf16, #tpu.memory_space<vmem>>, %arg7: memref<1x384xf32, #tpu.memory_space<vmem>>, %arg8: memref<8x128xf32, #tpu.memory_space<vmem>>) attributes {dimension_semantics = [#tpu.dimension_semantics<arbitrary>], iteration_bounds = array<i64: 1>, scalar_prefetch = 1 : i64, scratch_operands = 0 : i64, tpu.core_type = #tpu.core_type<tc>, window_params = [{pipeline_mode = #tpu.pipeline_mode<synchronous>, transform_indices = @transform_0, window_bounds = array<i64: 1, 128>}, {pipeline_mode = #tpu.pipeline_mode<synchronous>, transform_indices = @transform_1, window_bounds = array<i64: 50, 1, 128>}, {pipeline_mode = #tpu.pipeline_mode<synchronous>, transform_indices = @transform_2, window_bounds = array<i64: 128, 384>}, {pipeline_mode = #tpu.pipeline_mode<synchronous>, transform_indices = @transform_3, window_bounds = array<i64: 1, 384>}, {pipeline_mode = #tpu.pipeline_mode<synchronous>, transform_indices = @transform_4, window_bounds = array<i64: 128, 384>}, {pipeline_mode = #tpu.pipeline_mode<synchronous>, transform_indices = @transform_5, window_bounds = array<i64: 1, 384>}, {pipeline_mode = #tpu.pipeline_mode<synchronous>, transform_indices = @transform_6, window_bounds = array<i64: 8, 128>}]} {
    %c0 = arith.constant 0 : index
    %c0_0 = arith.constant 0 : index
    %0 = vector.load %arg2[%c0, %c0_0] : memref<1x128xf32, #tpu.memory_space<vmem>>, vector<1x128xf32>
    %c0_1 = arith.constant 0 : index
    %1 = memref.load %arg1[%c0_1] : memref<8xi32, #tpu.memory_space<smem>>
    %2 = arith.index_cast %1 : i32 to index
    %c0_2 = arith.constant 0 : index
    %c0_3 = arith.constant 0 : index
    %3 = vector.load %arg3[%2, %c0_2, %c0_3] : memref<50x1x128xf32, #tpu.memory_space<vmem>>, vector<1x1x128xf32>
    %4 = vector.shape_cast %3 : vector<1x1x128xf32> to vector<1x128xf32>
    %c0_4 = arith.constant 0 : index
    %c0_5 = arith.constant 0 : index
    %5 = vector.load %arg4[%c0_4, %c0_5] : memref<128x384xf32, #tpu.memory_space<vmem>>, vector<128x384xf32>
    %cst = arith.constant dense<0.000000e+00> : vector<1x384xf32>
    %6 = tpu.matmul %4, %5, %cst {dimension_numbers = #tpu.dot_dimension_numbers<[1], [0], [0], [1], [0, 0, 1, 1], [], []>} : vector<1x128xf32>, vector<128x384xf32>, vector<1x384xf32> -> vector<1x384xf32>
    %c0_6 = arith.constant 0 : index
    %c0_7 = arith.constant 0 : index
    %7 = vector.load %arg5[%c0_6, %c0_7] : memref<1x384xf32, #tpu.memory_space<vmem>>, vector<1x384xf32>
    %8 = arith.addf %6, %7 : vector<1x384xf32>
    %9 = arith.truncf %0 : vector<1x128xf32> to vector<1x128xbf16>
    %c0_8 = arith.constant 0 : index
    %c0_9 = arith.constant 0 : index
    %10 = vector.load %arg6[%c0_8, %c0_9] : memref<128x384xbf16, #tpu.memory_space<vmem>>, vector<128x384xbf16>
    %cst_10 = arith.constant dense<0.000000e+00> : vector<1x384xf32>
    %11 = tpu.matmul %9, %10, %cst_10 {dimension_numbers = #tpu.dot_dimension_numbers<[1], [0], [0], [1], [0, 0, 1, 1], [], []>} : vector<1x128xbf16>, vector<128x384xbf16>, vector<1x384xf32> -> vector<1x384xf32>
    %c0_11 = arith.constant 0 : index
    %c0_12 = arith.constant 0 : index
    %12 = vector.load %arg7[%c0_11, %c0_12] : memref<1x384xf32, #tpu.memory_space<vmem>>, vector<1x384xf32>
    %13 = arith.addf %11, %12 : vector<1x384xf32>
    %14 = vector.extract_strided_slice %8 {offsets = [0, 0], sizes = [1, 128], strides = [1, 1]} : vector<1x384xf32> to vector<1x128xf32>
    %15 = vector.extract_strided_slice %13 {offsets = [0, 0], sizes = [1, 128], strides = [1, 1]} : vector<1x384xf32> to vector<1x128xf32>
    %16 = arith.addf %14, %15 : vector<1x128xf32>
    %17 = arith.negf %16 : vector<1x128xf32>
    %18 = math.exp %17 : vector<1x128xf32>
    %cst_13 = arith.constant 1.000000e+00 : f32
    %19 = vector.broadcast %cst_13 : f32 to vector<1x128xf32>
    %20 = arith.addf %19, %18 : vector<1x128xf32>
    %21 = arith.divf %19, %20 : vector<1x128xf32>
    %22 = vector.extract_strided_slice %8 {offsets = [0, 128], sizes = [1, 128], strides = [1, 1]} : vector<1x384xf32> to vector<1x128xf32>
    %23 = vector.extract_strided_slice %13 {offsets = [0, 128], sizes = [1, 128], strides = [1, 1]} : vector<1x384xf32> to vector<1x128xf32>
    %24 = arith.addf %22, %23 : vector<1x128xf32>
    %25 = arith.negf %24 : vector<1x128xf32>
    %26 = math.exp %25 : vector<1x128xf32>
    %cst_14 = arith.constant 1.000000e+00 : f32
    %27 = vector.broadcast %cst_14 : f32 to vector<1x128xf32>
    %28 = arith.addf %27, %26 : vector<1x128xf32>
    %29 = arith.divf %27, %28 : vector<1x128xf32>
    %30 = vector.extract_strided_slice %8 {offsets = [0, 256], sizes = [1, 128], strides = [1, 1]} : vector<1x384xf32> to vector<1x128xf32>
    %31 = vector.extract_strided_slice %13 {offsets = [0, 256], sizes = [1, 128], strides = [1, 1]} : vector<1x384xf32> to vector<1x128xf32>
    %32 = arith.mulf %21, %31 : vector<1x128xf32>
    %33 = arith.addf %30, %32 : vector<1x128xf32>
    %34 = math.tanh %33 : vector<1x128xf32>
    %cst_15 = arith.constant 1.000000e+00 : f32
    %35 = vector.broadcast %cst_15 : f32 to vector<1x128xf32>
    %36 = arith.subf %35, %29 : vector<1x128xf32>
    %37 = arith.mulf %36, %34 : vector<1x128xf32>
    %38 = arith.mulf %29, %0 : vector<1x128xf32>
    %39 = arith.addf %37, %38 : vector<1x128xf32>
    %c1 = arith.constant 1 : index
    %40 = memref.load %arg1[%c1] : memref<8xi32, #tpu.memory_space<smem>>
    %41 = arith.index_cast %40 : i32 to index
    %c0_16 = arith.constant 0 : index
    %c0_17 = arith.constant 0 : index
    %42 = vector.load %arg3[%41, %c0_16, %c0_17] : memref<50x1x128xf32, #tpu.memory_space<vmem>>, vector<1x1x128xf32>
    %43 = vector.shape_cast %42 : vector<1x1x128xf32> to vector<1x128xf32>
    %c0_18 = arith.constant 0 : index
    %c0_19 = arith.constant 0 : index
    %44 = vector.load %arg4[%c0_18, %c0_19] : memref<128x384xf32, #tpu.memory_space<vmem>>, vector<128x384xf32>
    %cst_20 = arith.constant dense<0.000000e+00> : vector<1x384xf32>
    %45 = tpu.matmul %43, %44, %cst_20 {dimension_numbers = #tpu.dot_dimension_numbers<[1], [0], [0], [1], [0, 0, 1, 1], [], []>} : vector<1x128xf32>, vector<128x384xf32>, vector<1x384xf32> -> vector<1x384xf32>
    %c0_21 = arith.constant 0 : index
    %c0_22 = arith.constant 0 : index
    %46 = vector.load %arg5[%c0_21, %c0_22] : memref<1x384xf32, #tpu.memory_space<vmem>>, vector<1x384xf32>
    %47 = arith.addf %45, %46 : vector<1x384xf32>
    %48 = arith.truncf %39 : vector<1x128xf32> to vector<1x128xbf16>
    %c0_23 = arith.constant 0 : index
    %c0_24 = arith.constant 0 : index
    %49 = vector.load %arg6[%c0_23, %c0_24] : memref<128x384xbf16, #tpu.memory_space<vmem>>, vector<128x384xbf16>
    %cst_25 = arith.constant dense<0.000000e+00> : vector<1x384xf32>
    %50 = tpu.matmul %48, %49, %cst_25 {dimension_numbers = #tpu.dot_dimension_numbers<[1], [0], [0], [1], [0, 0, 1, 1], [], []>} : vector<1x128xbf16>, vector<128x384xbf16>, vector<1x384xf32> -> vector<1x384xf32>
    %c0_26 = arith.constant 0 : index
    %c0_27 = arith.constant 0 : index
    %51 = vector.load %arg7[%c0_26, %c0_27] : memref<1x384xf32, #tpu.memory_space<vmem>>, vector<1x384xf32>
    %52 = arith.addf %50, %51 : vector<1x384xf32>
    %53 = vector.extract_strided_slice %47 {offsets = [0, 0], sizes = [1, 128], strides = [1, 1]} : vector<1x384xf32> to vector<1x128xf32>
    %54 = vector.extract_strided_slice %52 {offsets = [0, 0], sizes = [1, 128], strides = [1, 1]} : vector<1x384xf32> to vector<1x128xf32>
    %55 = arith.addf %53, %54 : vector<1x128xf32>
    %56 = arith.negf %55 : vector<1x128xf32>
    %57 = math.exp %56 : vector<1x128xf32>
    %cst_28 = arith.constant 1.000000e+00 : f32
    %58 = vector.broadcast %cst_28 : f32 to vector<1x128xf32>
    %59 = arith.addf %58, %57 : vector<1x128xf32>
    %60 = arith.divf %58, %59 : vector<1x128xf32>
    %61 = vector.extract_strided_slice %47 {offsets = [0, 128], sizes = [1, 128], strides = [1, 1]} : vector<1x384xf32> to vector<1x128xf32>
    %62 = vector.extract_strided_slice %52 {offsets = [0, 128], sizes = [1, 128], strides = [1, 1]} : vector<1x384xf32> to vector<1x128xf32>
    %63 = arith.addf %61, %62 : vector<1x128xf32>
    %64 = arith.negf %63 : vector<1x128xf32>
    %65 = math.exp %64 : vector<1x128xf32>
    %cst_29 = arith.constant 1.000000e+00 : f32
    %66 = vector.broadcast %cst_29 : f32 to vector<1x128xf32>
    %67 = arith.addf %66, %65 : vector<1x128xf32>
    %68 = arith.divf %66, %67 : vector<1x128xf32>
    %69 = vector.extract_strided_slice %47 {offsets = [0, 256], sizes = [1, 128], strides = [1, 1]} : vector<1x384xf32> to vector<1x128xf32>
    %70 = vector.extract_strided_slice %52 {offsets = [0, 256], sizes = [1, 128], strides = [1, 1]} : vector<1x384xf32> to vector<1x128xf32>
    %71 = arith.mulf %60, %70 : vector<1x128xf32>
    %72 = arith.addf %69, %71 : vector<1x128xf32>
    %73 = math.tanh %72 : vector<1x128xf32>
    %cst_30 = arith.constant 1.000000e+00 : f32
    %74 = vector.broadcast %cst_30 : f32 to vector<1x128xf32>
    %75 = arith.subf %74, %68 : vector<1x128xf32>
    %76 = arith.mulf %75, %73 : vector<1x128xf32>
    %77 = arith.mulf %68, %39 : vector<1x128xf32>
    %78 = arith.addf %76, %77 : vector<1x128xf32>
    %c2 = arith.constant 2 : index
    %79 = memref.load %arg1[%c2] : memref<8xi32, #tpu.memory_space<smem>>
    %80 = arith.index_cast %79 : i32 to index
    %c0_31 = arith.constant 0 : index
    %c0_32 = arith.constant 0 : index
    %81 = vector.load %arg3[%80, %c0_31, %c0_32] : memref<50x1x128xf32, #tpu.memory_space<vmem>>, vector<1x1x128xf32>
    %82 = vector.shape_cast %81 : vector<1x1x128xf32> to vector<1x128xf32>
    %c0_33 = arith.constant 0 : index
    %c0_34 = arith.constant 0 : index
    %83 = vector.load %arg4[%c0_33, %c0_34] : memref<128x384xf32, #tpu.memory_space<vmem>>, vector<128x384xf32>
    %cst_35 = arith.constant dense<0.000000e+00> : vector<1x384xf32>
    %84 = tpu.matmul %82, %83, %cst_35 {dimension_numbers = #tpu.dot_dimension_numbers<[1], [0], [0], [1], [0, 0, 1, 1], [], []>} : vector<1x128xf32>, vector<128x384xf32>, vector<1x384xf32> -> vector<1x384xf32>
    %c0_36 = arith.constant 0 : index
    %c0_37 = arith.constant 0 : index
    %85 = vector.load %arg5[%c0_36, %c0_37] : memref<1x384xf32, #tpu.memory_space<vmem>>, vector<1x384xf32>
    %86 = arith.addf %84, %85 : vector<1x384xf32>
    %87 = arith.truncf %78 : vector<1x128xf32> to vector<1x128xbf16>
    %c0_38 = arith.constant 0 : index
    %c0_39 = arith.constant 0 : index
    %88 = vector.load %arg6[%c0_38, %c0_39] : memref<128x384xbf16, #tpu.memory_space<vmem>>, vector<128x384xbf16>
    %cst_40 = arith.constant dense<0.000000e+00> : vector<1x384xf32>
    %89 = tpu.matmul %87, %88, %cst_40 {dimension_numbers = #tpu.dot_dimension_numbers<[1], [0], [0], [1], [0, 0, 1, 1], [], []>} : vector<1x128xbf16>, vector<128x384xbf16>, vector<1x384xf32> -> vector<1x384xf32>
    %c0_41 = arith.constant 0 : index
    %c0_42 = arith.constant 0 : index
    %90 = vector.load %arg7[%c0_41, %c0_42] : memref<1x384xf32, #tpu.memory_space<vmem>>, vector<1x384xf32>
    %91 = arith.addf %89, %90 : vector<1x384xf32>
    %92 = vector.extract_strided_slice %86 {offsets = [0, 0], sizes = [1, 128], strides = [1, 1]} : vector<1x384xf32> to vector<1x128xf32>
    %93 = vector.extract_strided_slice %91 {offsets = [0, 0], sizes = [1, 128], strides = [1, 1]} : vector<1x384xf32> to vector<1x128xf32>
    %94 = arith.addf %92, %93 : vector<1x128xf32>
    %95 = arith.negf %94 : vector<1x128xf32>
    %96 = math.exp %95 : vector<1x128xf32>
    %cst_43 = arith.constant 1.000000e+00 : f32
    %97 = vector.broadcast %cst_43 : f32 to vector<1x128xf32>
    %98 = arith.addf %97, %96 : vector<1x128xf32>
    %99 = arith.divf %97, %98 : vector<1x128xf32>
    %100 = vector.extract_strided_slice %86 {offsets = [0, 128], sizes = [1, 128], strides = [1, 1]} : vector<1x384xf32> to vector<1x128xf32>
    %101 = vector.extract_strided_slice %91 {offsets = [0, 128], sizes = [1, 128], strides = [1, 1]} : vector<1x384xf32> to vector<1x128xf32>
    %102 = arith.addf %100, %101 : vector<1x128xf32>
    %103 = arith.negf %102 : vector<1x128xf32>
    %104 = math.exp %103 : vector<1x128xf32>
    %cst_44 = arith.constant 1.000000e+00 : f32
    %105 = vector.broadcast %cst_44 : f32 to vector<1x128xf32>
    %106 = arith.addf %105, %104 : vector<1x128xf32>
    %107 = arith.divf %105, %106 : vector<1x128xf32>
    %108 = vector.extract_strided_slice %86 {offsets = [0, 256], sizes = [1, 128], strides = [1, 1]} : vector<1x384xf32> to vector<1x128xf32>
    %109 = vector.extract_strided_slice %91 {offsets = [0, 256], sizes = [1, 128], strides = [1, 1]} : vector<1x384xf32> to vector<1x128xf32>
    %110 = arith.mulf %99, %109 : vector<1x128xf32>
    %111 = arith.addf %108, %110 : vector<1x128xf32>
    %112 = math.tanh %111 : vector<1x128xf32>
    %cst_45 = arith.constant 1.000000e+00 : f32
    %113 = vector.broadcast %cst_45 : f32 to vector<1x128xf32>
    %114 = arith.subf %113, %107 : vector<1x128xf32>
    %115 = arith.mulf %114, %112 : vector<1x128xf32>
    %116 = arith.mulf %107, %78 : vector<1x128xf32>
    %117 = arith.addf %115, %116 : vector<1x128xf32>
    %c3 = arith.constant 3 : index
    %118 = memref.load %arg1[%c3] : memref<8xi32, #tpu.memory_space<smem>>
    %119 = arith.index_cast %118 : i32 to index
    %c0_46 = arith.constant 0 : index
    %c0_47 = arith.constant 0 : index
    %120 = vector.load %arg3[%119, %c0_46, %c0_47] : memref<50x1x128xf32, #tpu.memory_space<vmem>>, vector<1x1x128xf32>
    %121 = vector.shape_cast %120 : vector<1x1x128xf32> to vector<1x128xf32>
    %c0_48 = arith.constant 0 : index
    %c0_49 = arith.constant 0 : index
    %122 = vector.load %arg4[%c0_48, %c0_49] : memref<128x384xf32, #tpu.memory_space<vmem>>, vector<128x384xf32>
    %cst_50 = arith.constant dense<0.000000e+00> : vector<1x384xf32>
    %123 = tpu.matmul %121, %122, %cst_50 {dimension_numbers = #tpu.dot_dimension_numbers<[1], [0], [0], [1], [0, 0, 1, 1], [], []>} : vector<1x128xf32>, vector<128x384xf32>, vector<1x384xf32> -> vector<1x384xf32>
    %c0_51 = arith.constant 0 : index
    %c0_52 = arith.constant 0 : index
    %124 = vector.load %arg5[%c0_51, %c0_52] : memref<1x384xf32, #tpu.memory_space<vmem>>, vector<1x384xf32>
    %125 = arith.addf %123, %124 : vector<1x384xf32>
    %126 = arith.truncf %117 : vector<1x128xf32> to vector<1x128xbf16>
    %c0_53 = arith.constant 0 : index
    %c0_54 = arith.constant 0 : index
    %127 = vector.load %arg6[%c0_53, %c0_54] : memref<128x384xbf16, #tpu.memory_space<vmem>>, vector<128x384xbf16>
    %cst_55 = arith.constant dense<0.000000e+00> : vector<1x384xf32>
    %128 = tpu.matmul %126, %127, %cst_55 {dimension_numbers = #tpu.dot_dimension_numbers<[1], [0], [0], [1], [0, 0, 1, 1], [], []>} : vector<1x128xbf16>, vector<128x384xbf16>, vector<1x384xf32> -> vector<1x384xf32>
    %c0_56 = arith.constant 0 : index
    %c0_57 = arith.constant 0 : index
    %129 = vector.load %arg7[%c0_56, %c0_57] : memref<1x384xf32, #tpu.memory_space<vmem>>, vector<1x384xf32>
    %130 = arith.addf %128, %129 : vector<1x384xf32>
    %131 = vector.extract_strided_slice %125 {offsets = [0, 0], sizes = [1, 128], strides = [1, 1]} : vector<1x384xf32> to vector<1x128xf32>
    %132 = vector.extract_strided_slice %130 {offsets = [0, 0], sizes = [1, 128], strides = [1, 1]} : vector<1x384xf32> to vector<1x128xf32>
    %133 = arith.addf %131, %132 : vector<1x128xf32>
    %134 = arith.negf %133 : vector<1x128xf32>
    %135 = math.exp %134 : vector<1x128xf32>
    %cst_58 = arith.constant 1.000000e+00 : f32
    %136 = vector.broadcast %cst_58 : f32 to vector<1x128xf32>
    %137 = arith.addf %136, %135 : vector<1x128xf32>
    %138 = arith.divf %136, %137 : vector<1x128xf32>
    %139 = vector.extract_strided_slice %125 {offsets = [0, 128], sizes = [1, 128], strides = [1, 1]} : vector<1x384xf32> to vector<1x128xf32>
    %140 = vector.extract_strided_slice %130 {offsets = [0, 128], sizes = [1, 128], strides = [1, 1]} : vector<1x384xf32> to vector<1x128xf32>
    %141 = arith.addf %139, %140 : vector<1x128xf32>
    %142 = arith.negf %141 : vector<1x128xf32>
    %143 = math.exp %142 : vector<1x128xf32>
    %cst_59 = arith.constant 1.000000e+00 : f32
    %144 = vector.broadcast %cst_59 : f32 to vector<1x128xf32>
    %145 = arith.addf %144, %143 : vector<1x128xf32>
    %146 = arith.divf %144, %145 : vector<1x128xf32>
    %147 = vector.extract_strided_slice %125 {offsets = [0, 256], sizes = [1, 128], strides = [1, 1]} : vector<1x384xf32> to vector<1x128xf32>
    %148 = vector.extract_strided_slice %130 {offsets = [0, 256], sizes = [1, 128], strides = [1, 1]} : vector<1x384xf32> to vector<1x128xf32>
    %149 = arith.mulf %138, %148 : vector<1x128xf32>
    %150 = arith.addf %147, %149 : vector<1x128xf32>
    %151 = math.tanh %150 : vector<1x128xf32>
    %cst_60 = arith.constant 1.000000e+00 : f32
    %152 = vector.broadcast %cst_60 : f32 to vector<1x128xf32>
    %153 = arith.subf %152, %146 : vector<1x128xf32>
    %154 = arith.mulf %153, %151 : vector<1x128xf32>
    %155 = arith.mulf %146, %117 : vector<1x128xf32>
    %156 = arith.addf %154, %155 : vector<1x128xf32>
    %c4 = arith.constant 4 : index
    %157 = memref.load %arg1[%c4] : memref<8xi32, #tpu.memory_space<smem>>
    %158 = arith.index_cast %157 : i32 to index
    %c0_61 = arith.constant 0 : index
    %c0_62 = arith.constant 0 : index
    %159 = vector.load %arg3[%158, %c0_61, %c0_62] : memref<50x1x128xf32, #tpu.memory_space<vmem>>, vector<1x1x128xf32>
    %160 = vector.shape_cast %159 : vector<1x1x128xf32> to vector<1x128xf32>
    %c0_63 = arith.constant 0 : index
    %c0_64 = arith.constant 0 : index
    %161 = vector.load %arg4[%c0_63, %c0_64] : memref<128x384xf32, #tpu.memory_space<vmem>>, vector<128x384xf32>
    %cst_65 = arith.constant dense<0.000000e+00> : vector<1x384xf32>
    %162 = tpu.matmul %160, %161, %cst_65 {dimension_numbers = #tpu.dot_dimension_numbers<[1], [0], [0], [1], [0, 0, 1, 1], [], []>} : vector<1x128xf32>, vector<128x384xf32>, vector<1x384xf32> -> vector<1x384xf32>
    %c0_66 = arith.constant 0 : index
    %c0_67 = arith.constant 0 : index
    %163 = vector.load %arg5[%c0_66, %c0_67] : memref<1x384xf32, #tpu.memory_space<vmem>>, vector<1x384xf32>
    %164 = arith.addf %162, %163 : vector<1x384xf32>
    %165 = arith.truncf %156 : vector<1x128xf32> to vector<1x128xbf16>
    %c0_68 = arith.constant 0 : index
    %c0_69 = arith.constant 0 : index
    %166 = vector.load %arg6[%c0_68, %c0_69] : memref<128x384xbf16, #tpu.memory_space<vmem>>, vector<128x384xbf16>
    %cst_70 = arith.constant dense<0.000000e+00> : vector<1x384xf32>
    %167 = tpu.matmul %165, %166, %cst_70 {dimension_numbers = #tpu.dot_dimension_numbers<[1], [0], [0], [1], [0, 0, 1, 1], [], []>} : vector<1x128xbf16>, vector<128x384xbf16>, vector<1x384xf32> -> vector<1x384xf32>
    %c0_71 = arith.constant 0 : index
    %c0_72 = arith.constant 0 : index
    %168 = vector.load %arg7[%c0_71, %c0_72] : memref<1x384xf32, #tpu.memory_space<vmem>>, vector<1x384xf32>
    %169 = arith.addf %167, %168 : vector<1x384xf32>
    %170 = vector.extract_strided_slice %164 {offsets = [0, 0], sizes = [1, 128], strides = [1, 1]} : vector<1x384xf32> to vector<1x128xf32>
    %171 = vector.extract_strided_slice %169 {offsets = [0, 0], sizes = [1, 128], strides = [1, 1]} : vector<1x384xf32> to vector<1x128xf32>
    %172 = arith.addf %170, %171 : vector<1x128xf32>
    %173 = arith.negf %172 : vector<1x128xf32>
    %174 = math.exp %173 : vector<1x128xf32>
    %cst_73 = arith.constant 1.000000e+00 : f32
    %175 = vector.broadcast %cst_73 : f32 to vector<1x128xf32>
    %176 = arith.addf %175, %174 : vector<1x128xf32>
    %177 = arith.divf %175, %176 : vector<1x128xf32>
    %178 = vector.extract_strided_slice %164 {offsets = [0, 128], sizes = [1, 128], strides = [1, 1]} : vector<1x384xf32> to vector<1x128xf32>
    %179 = vector.extract_strided_slice %169 {offsets = [0, 128], sizes = [1, 128], strides = [1, 1]} : vector<1x384xf32> to vector<1x128xf32>
    %180 = arith.addf %178, %179 : vector<1x128xf32>
    %181 = arith.negf %180 : vector<1x128xf32>
    %182 = math.exp %181 : vector<1x128xf32>
    %cst_74 = arith.constant 1.000000e+00 : f32
    %183 = vector.broadcast %cst_74 : f32 to vector<1x128xf32>
    %184 = arith.addf %183, %182 : vector<1x128xf32>
    %185 = arith.divf %183, %184 : vector<1x128xf32>
    %186 = vector.extract_strided_slice %164 {offsets = [0, 256], sizes = [1, 128], strides = [1, 1]} : vector<1x384xf32> to vector<1x128xf32>
    %187 = vector.extract_strided_slice %169 {offsets = [0, 256], sizes = [1, 128], strides = [1, 1]} : vector<1x384xf32> to vector<1x128xf32>
    %188 = arith.mulf %177, %187 : vector<1x128xf32>
    %189 = arith.addf %186, %188 : vector<1x128xf32>
    %190 = math.tanh %189 : vector<1x128xf32>
    %cst_75 = arith.constant 1.000000e+00 : f32
    %191 = vector.broadcast %cst_75 : f32 to vector<1x128xf32>
    %192 = arith.subf %191, %185 : vector<1x128xf32>
    %193 = arith.mulf %192, %190 : vector<1x128xf32>
    %194 = arith.mulf %185, %156 : vector<1x128xf32>
    %195 = arith.addf %193, %194 : vector<1x128xf32>
    %c5 = arith.constant 5 : index
    %196 = memref.load %arg1[%c5] : memref<8xi32, #tpu.memory_space<smem>>
    %197 = arith.index_cast %196 : i32 to index
    %c0_76 = arith.constant 0 : index
    %c0_77 = arith.constant 0 : index
    %198 = vector.load %arg3[%197, %c0_76, %c0_77] : memref<50x1x128xf32, #tpu.memory_space<vmem>>, vector<1x1x128xf32>
    %199 = vector.shape_cast %198 : vector<1x1x128xf32> to vector<1x128xf32>
    %c0_78 = arith.constant 0 : index
    %c0_79 = arith.constant 0 : index
    %200 = vector.load %arg4[%c0_78, %c0_79] : memref<128x384xf32, #tpu.memory_space<vmem>>, vector<128x384xf32>
    %cst_80 = arith.constant dense<0.000000e+00> : vector<1x384xf32>
    %201 = tpu.matmul %199, %200, %cst_80 {dimension_numbers = #tpu.dot_dimension_numbers<[1], [0], [0], [1], [0, 0, 1, 1], [], []>} : vector<1x128xf32>, vector<128x384xf32>, vector<1x384xf32> -> vector<1x384xf32>
    %c0_81 = arith.constant 0 : index
    %c0_82 = arith.constant 0 : index
    %202 = vector.load %arg5[%c0_81, %c0_82] : memref<1x384xf32, #tpu.memory_space<vmem>>, vector<1x384xf32>
    %203 = arith.addf %201, %202 : vector<1x384xf32>
    %204 = arith.truncf %195 : vector<1x128xf32> to vector<1x128xbf16>
    %c0_83 = arith.constant 0 : index
    %c0_84 = arith.constant 0 : index
    %205 = vector.load %arg6[%c0_83, %c0_84] : memref<128x384xbf16, #tpu.memory_space<vmem>>, vector<128x384xbf16>
    %cst_85 = arith.constant dense<0.000000e+00> : vector<1x384xf32>
    %206 = tpu.matmul %204, %205, %cst_85 {dimension_numbers = #tpu.dot_dimension_numbers<[1], [0], [0], [1], [0, 0, 1, 1], [], []>} : vector<1x128xbf16>, vector<128x384xbf16>, vector<1x384xf32> -> vector<1x384xf32>
    %c0_86 = arith.constant 0 : index
    %c0_87 = arith.constant 0 : index
    %207 = vector.load %arg7[%c0_86, %c0_87] : memref<1x384xf32, #tpu.memory_space<vmem>>, vector<1x384xf32>
    %208 = arith.addf %206, %207 : vector<1x384xf32>
    %209 = vector.extract_strided_slice %203 {offsets = [0, 0], sizes = [1, 128], strides = [1, 1]} : vector<1x384xf32> to vector<1x128xf32>
    %210 = vector.extract_strided_slice %208 {offsets = [0, 0], sizes = [1, 128], strides = [1, 1]} : vector<1x384xf32> to vector<1x128xf32>
    %211 = arith.addf %209, %210 : vector<1x128xf32>
    %212 = arith.negf %211 : vector<1x128xf32>
    %213 = math.exp %212 : vector<1x128xf32>
    %cst_88 = arith.constant 1.000000e+00 : f32
    %214 = vector.broadcast %cst_88 : f32 to vector<1x128xf32>
    %215 = arith.addf %214, %213 : vector<1x128xf32>
    %216 = arith.divf %214, %215 : vector<1x128xf32>
    %217 = vector.extract_strided_slice %203 {offsets = [0, 128], sizes = [1, 128], strides = [1, 1]} : vector<1x384xf32> to vector<1x128xf32>
    %218 = vector.extract_strided_slice %208 {offsets = [0, 128], sizes = [1, 128], strides = [1, 1]} : vector<1x384xf32> to vector<1x128xf32>
    %219 = arith.addf %217, %218 : vector<1x128xf32>
    %220 = arith.negf %219 : vector<1x128xf32>
    %221 = math.exp %220 : vector<1x128xf32>
    %cst_89 = arith.constant 1.000000e+00 : f32
    %222 = vector.broadcast %cst_89 : f32 to vector<1x128xf32>
    %223 = arith.addf %222, %221 : vector<1x128xf32>
    %224 = arith.divf %222, %223 : vector<1x128xf32>
    %225 = vector.extract_strided_slice %203 {offsets = [0, 256], sizes = [1, 128], strides = [1, 1]} : vector<1x384xf32> to vector<1x128xf32>
    %226 = vector.extract_strided_slice %208 {offsets = [0, 256], sizes = [1, 128], strides = [1, 1]} : vector<1x384xf32> to vector<1x128xf32>
    %227 = arith.mulf %216, %226 : vector<1x128xf32>
    %228 = arith.addf %225, %227 : vector<1x128xf32>
    %229 = math.tanh %228 : vector<1x128xf32>
    %cst_90 = arith.constant 1.000000e+00 : f32
    %230 = vector.broadcast %cst_90 : f32 to vector<1x128xf32>
    %231 = arith.subf %230, %224 : vector<1x128xf32>
    %232 = arith.mulf %231, %229 : vector<1x128xf32>
    %233 = arith.mulf %224, %195 : vector<1x128xf32>
    %234 = arith.addf %232, %233 : vector<1x128xf32>
    %c6 = arith.constant 6 : index
    %235 = memref.load %arg1[%c6] : memref<8xi32, #tpu.memory_space<smem>>
    %236 = arith.index_cast %235 : i32 to index
    %c0_91 = arith.constant 0 : index
    %c0_92 = arith.constant 0 : index
    %237 = vector.load %arg3[%236, %c0_91, %c0_92] : memref<50x1x128xf32, #tpu.memory_space<vmem>>, vector<1x1x128xf32>
    %238 = vector.shape_cast %237 : vector<1x1x128xf32> to vector<1x128xf32>
    %c0_93 = arith.constant 0 : index
    %c0_94 = arith.constant 0 : index
    %239 = vector.load %arg4[%c0_93, %c0_94] : memref<128x384xf32, #tpu.memory_space<vmem>>, vector<128x384xf32>
    %cst_95 = arith.constant dense<0.000000e+00> : vector<1x384xf32>
    %240 = tpu.matmul %238, %239, %cst_95 {dimension_numbers = #tpu.dot_dimension_numbers<[1], [0], [0], [1], [0, 0, 1, 1], [], []>} : vector<1x128xf32>, vector<128x384xf32>, vector<1x384xf32> -> vector<1x384xf32>
    %c0_96 = arith.constant 0 : index
    %c0_97 = arith.constant 0 : index
    %241 = vector.load %arg5[%c0_96, %c0_97] : memref<1x384xf32, #tpu.memory_space<vmem>>, vector<1x384xf32>
    %242 = arith.addf %240, %241 : vector<1x384xf32>
    %243 = arith.truncf %234 : vector<1x128xf32> to vector<1x128xbf16>
    %c0_98 = arith.constant 0 : index
    %c0_99 = arith.constant 0 : index
    %244 = vector.load %arg6[%c0_98, %c0_99] : memref<128x384xbf16, #tpu.memory_space<vmem>>, vector<128x384xbf16>
    %cst_100 = arith.constant dense<0.000000e+00> : vector<1x384xf32>
    %245 = tpu.matmul %243, %244, %cst_100 {dimension_numbers = #tpu.dot_dimension_numbers<[1], [0], [0], [1], [0, 0, 1, 1], [], []>} : vector<1x128xbf16>, vector<128x384xbf16>, vector<1x384xf32> -> vector<1x384xf32>
    %c0_101 = arith.constant 0 : index
    %c0_102 = arith.constant 0 : index
    %246 = vector.load %arg7[%c0_101, %c0_102] : memref<1x384xf32, #tpu.memory_space<vmem>>, vector<1x384xf32>
    %247 = arith.addf %245, %246 : vector<1x384xf32>
    %248 = vector.extract_strided_slice %242 {offsets = [0, 0], sizes = [1, 128], strides = [1, 1]} : vector<1x384xf32> to vector<1x128xf32>
    %249 = vector.extract_strided_slice %247 {offsets = [0, 0], sizes = [1, 128], strides = [1, 1]} : vector<1x384xf32> to vector<1x128xf32>
    %250 = arith.addf %248, %249 : vector<1x128xf32>
    %251 = arith.negf %250 : vector<1x128xf32>
    %252 = math.exp %251 : vector<1x128xf32>
    %cst_103 = arith.constant 1.000000e+00 : f32
    %253 = vector.broadcast %cst_103 : f32 to vector<1x128xf32>
    %254 = arith.addf %253, %252 : vector<1x128xf32>
    %255 = arith.divf %253, %254 : vector<1x128xf32>
    %256 = vector.extract_strided_slice %242 {offsets = [0, 128], sizes = [1, 128], strides = [1, 1]} : vector<1x384xf32> to vector<1x128xf32>
    %257 = vector.extract_strided_slice %247 {offsets = [0, 128], sizes = [1, 128], strides = [1, 1]} : vector<1x384xf32> to vector<1x128xf32>
    %258 = arith.addf %256, %257 : vector<1x128xf32>
    %259 = arith.negf %258 : vector<1x128xf32>
    %260 = math.exp %259 : vector<1x128xf32>
    %cst_104 = arith.constant 1.000000e+00 : f32
    %261 = vector.broadcast %cst_104 : f32 to vector<1x128xf32>
    %262 = arith.addf %261, %260 : vector<1x128xf32>
    %263 = arith.divf %261, %262 : vector<1x128xf32>
    %264 = vector.extract_strided_slice %242 {offsets = [0, 256], sizes = [1, 128], strides = [1, 1]} : vector<1x384xf32> to vector<1x128xf32>
    %265 = vector.extract_strided_slice %247 {offsets = [0, 256], sizes = [1, 128], strides = [1, 1]} : vector<1x384xf32> to vector<1x128xf32>
    %266 = arith.mulf %255, %265 : vector<1x128xf32>
    %267 = arith.addf %264, %266 : vector<1x128xf32>
    %268 = math.tanh %267 : vector<1x128xf32>
    %cst_105 = arith.constant 1.000000e+00 : f32
    %269 = vector.broadcast %cst_105 : f32 to vector<1x128xf32>
    %270 = arith.subf %269, %263 : vector<1x128xf32>
    %271 = arith.mulf %270, %268 : vector<1x128xf32>
    %272 = arith.mulf %263, %234 : vector<1x128xf32>
    %273 = arith.addf %271, %272 : vector<1x128xf32>
    %c7 = arith.constant 7 : index
    %274 = memref.load %arg1[%c7] : memref<8xi32, #tpu.memory_space<smem>>
    %275 = arith.index_cast %274 : i32 to index
    %c0_106 = arith.constant 0 : index
    %c0_107 = arith.constant 0 : index
    %276 = vector.load %arg3[%275, %c0_106, %c0_107] : memref<50x1x128xf32, #tpu.memory_space<vmem>>, vector<1x1x128xf32>
    %277 = vector.shape_cast %276 : vector<1x1x128xf32> to vector<1x128xf32>
    %c0_108 = arith.constant 0 : index
    %c0_109 = arith.constant 0 : index
    %278 = vector.load %arg4[%c0_108, %c0_109] : memref<128x384xf32, #tpu.memory_space<vmem>>, vector<128x384xf32>
    %cst_110 = arith.constant dense<0.000000e+00> : vector<1x384xf32>
    %279 = tpu.matmul %277, %278, %cst_110 {dimension_numbers = #tpu.dot_dimension_numbers<[1], [0], [0], [1], [0, 0, 1, 1], [], []>} : vector<1x128xf32>, vector<128x384xf32>, vector<1x384xf32> -> vector<1x384xf32>
    %c0_111 = arith.constant 0 : index
    %c0_112 = arith.constant 0 : index
    %280 = vector.load %arg5[%c0_111, %c0_112] : memref<1x384xf32, #tpu.memory_space<vmem>>, vector<1x384xf32>
    %281 = arith.addf %279, %280 : vector<1x384xf32>
    %282 = arith.truncf %273 : vector<1x128xf32> to vector<1x128xbf16>
    %c0_113 = arith.constant 0 : index
    %c0_114 = arith.constant 0 : index
    %283 = vector.load %arg6[%c0_113, %c0_114] : memref<128x384xbf16, #tpu.memory_space<vmem>>, vector<128x384xbf16>
    %cst_115 = arith.constant dense<0.000000e+00> : vector<1x384xf32>
    %284 = tpu.matmul %282, %283, %cst_115 {dimension_numbers = #tpu.dot_dimension_numbers<[1], [0], [0], [1], [0, 0, 1, 1], [], []>} : vector<1x128xbf16>, vector<128x384xbf16>, vector<1x384xf32> -> vector<1x384xf32>
    %c0_116 = arith.constant 0 : index
    %c0_117 = arith.constant 0 : index
    %285 = vector.load %arg7[%c0_116, %c0_117] : memref<1x384xf32, #tpu.memory_space<vmem>>, vector<1x384xf32>
    %286 = arith.addf %284, %285 : vector<1x384xf32>
    %287 = vector.extract_strided_slice %281 {offsets = [0, 0], sizes = [1, 128], strides = [1, 1]} : vector<1x384xf32> to vector<1x128xf32>
    %288 = vector.extract_strided_slice %286 {offsets = [0, 0], sizes = [1, 128], strides = [1, 1]} : vector<1x384xf32> to vector<1x128xf32>
    %289 = arith.addf %287, %288 : vector<1x128xf32>
    %290 = arith.negf %289 : vector<1x128xf32>
    %291 = math.exp %290 : vector<1x128xf32>
    %cst_118 = arith.constant 1.000000e+00 : f32
    %292 = vector.broadcast %cst_118 : f32 to vector<1x128xf32>
    %293 = arith.addf %292, %291 : vector<1x128xf32>
    %294 = arith.divf %292, %293 : vector<1x128xf32>
    %295 = vector.extract_strided_slice %281 {offsets = [0, 128], sizes = [1, 128], strides = [1, 1]} : vector<1x384xf32> to vector<1x128xf32>
    %296 = vector.extract_strided_slice %286 {offsets = [0, 128], sizes = [1, 128], strides = [1, 1]} : vector<1x384xf32> to vector<1x128xf32>
    %297 = arith.addf %295, %296 : vector<1x128xf32>
    %298 = arith.negf %297 : vector<1x128xf32>
    %299 = math.exp %298 : vector<1x128xf32>
    %cst_119 = arith.constant 1.000000e+00 : f32
    %300 = vector.broadcast %cst_119 : f32 to vector<1x128xf32>
    %301 = arith.addf %300, %299 : vector<1x128xf32>
    %302 = arith.divf %300, %301 : vector<1x128xf32>
    %303 = vector.extract_strided_slice %281 {offsets = [0, 256], sizes = [1, 128], strides = [1, 1]} : vector<1x384xf32> to vector<1x128xf32>
    %304 = vector.extract_strided_slice %286 {offsets = [0, 256], sizes = [1, 128], strides = [1, 1]} : vector<1x384xf32> to vector<1x128xf32>
    %305 = arith.mulf %294, %304 : vector<1x128xf32>
    %306 = arith.addf %303, %305 : vector<1x128xf32>
    %307 = math.tanh %306 : vector<1x128xf32>
    %cst_120 = arith.constant 1.000000e+00 : f32
    %308 = vector.broadcast %cst_120 : f32 to vector<1x128xf32>
    %309 = arith.subf %308, %302 : vector<1x128xf32>
    %310 = arith.mulf %309, %307 : vector<1x128xf32>
    %311 = arith.mulf %302, %273 : vector<1x128xf32>
    %312 = arith.addf %310, %311 : vector<1x128xf32>
    %313 = tpu.concatenate %39, %78, %117, %156, %195, %234, %273, %312 in 0 : vector<1x128xf32>, vector<1x128xf32>, vector<1x128xf32>, vector<1x128xf32>, vector<1x128xf32>, vector<1x128xf32>, vector<1x128xf32>, vector<1x128xf32> -> vector<8x128xf32>
    %c0_121 = arith.constant 0 : index
    %c0_122 = arith.constant 0 : index
    %314 = vector.load %arg8[%c0_121, %c0_122] : memref<8x128xf32, #tpu.memory_space<vmem>>, vector<8x128xf32>
    tpu.vector_store %arg8[%c0_121, %c0_122], %313 {strides = array<i32>} : memref<8x128xf32, #tpu.memory_space<vmem>>, vector<8x128xf32>,
    return
  }
  func.func @transform_0(%arg0: i32, %arg1: memref<8xi32, #tpu.memory_space<smem>>) -> (i32, i32) {
    %c0_i32 = arith.constant 0 : i32
    %c0_i32_0 = arith.constant 0 : i32
    %c0_i32_1 = arith.constant 0 : i32
    return %c0_i32, %c0_i32_0 : i32, i32
  }
  func.func @transform_1(%arg0: i32, %arg1: memref<8xi32, #tpu.memory_space<smem>>) -> (i32, i32, i32) {
    %c0_i32 = arith.constant 0 : i32
    %c0_i32_0 = arith.constant 0 : i32
    %c0_i32_1 = arith.constant 0 : i32
    %c0_i32_2 = arith.constant 0 : i32
    return %c0_i32, %c0_i32_0, %c0_i32_1 : i32, i32, i32
  }
  func.func @transform_2(%arg0: i32, %arg1: memref<8xi32, #tpu.memory_space<smem>>) -> (i32, i32) {
    %c0_i32 = arith.constant 0 : i32
    %c0_i32_0 = arith.constant 0 : i32
    %c0_i32_1 = arith.constant 0 : i32
    return %c0_i32, %c0_i32_0 : i32, i32
  }
  func.func @transform_3(%arg0: i32, %arg1: memref<8xi32, #tpu.memory_space<smem>>) -> (i32, i32) {
    %c0_i32 = arith.constant 0 : i32
    %c0_i32_0 = arith.constant 0 : i32
    %c0_i32_1 = arith.constant 0 : i32
    return %c0_i32, %c0_i32_0 : i32, i32
  }
  func.func @transform_4(%arg0: i32, %arg1: memref<8xi32, #tpu.memory_space<smem>>) -> (i32, i32) {
    %c0_i32 = arith.constant 0 : i32
    %c0_i32_0 = arith.constant 0 : i32
    %c0_i32_1 = arith.constant 0 : i32
    return %c0_i32, %c0_i32_0 : i32, i32
  }
  func.func @transform_5(%arg0: i32, %arg1: memref<8xi32, #tpu.memory_space<smem>>) -> (i32, i32) {
    %c0_i32 = arith.constant 0 : i32
    %c0_i32_0 = arith.constant 0 : i32
    %c0_i32_1 = arith.constant 0 : i32
    return %c0_i32, %c0_i32_0 : i32, i32
  }
  func.func @transform_6(%arg0: i32, %arg1: memref<8xi32, #tpu.memory_space<smem>>) -> (i32, i32) {
    %c0_i32 = arith.constant 0 : i32
    %c0_i32_0 = arith.constant 0 : i32
    %c0_i32_1 = arith.constant 0 : i32
    return %c0_i32, %c0_i32_0 : i32, i32
  }
}

</mosaic_0001>

<llo_original>
// kernel: encoder_forward_seq.1
$region0: #{encoder_forward_seq.1}
  #allocation0 [shape = 'u32[]', space=smem, size = 0x4, offset = 0x4, fixed_abs, tag = 'smem constant byte address 0x4 - core index']
  #allocation1 [shape = 'u32[72,128]{1,0:T(1,128)}', space=vmem, size = 0x9000, scoped, tag = 'internal scratch']
  #allocation2 [shape = 's32[1]{0}', space=sflag, size = 0x4, scoped, tag = 'scoped memory for encoder_forward_seq.1']
  #allocation3 [shape = 'u8[512]{0}', space=smem, size = 0x200, scoped, tag = 'prefetched SMEM operand 0']
  %s0 = inlined_call_operand.hbm [shape: s32[8], index: 0, kind: input, shape index: {}]
  %s1 = inlined_call_operand.vmem [shape: f32[1,128], index: 1, kind: input, shape index: {}]
  %s2 = inlined_call_operand.hbm [shape: f32[50,1,128], index: 2, kind: input, shape index: {}]
  %s3 = inlined_call_operand.hbm [shape: f32[128,384], index: 3, kind: input, shape index: {}]
  %s4 = inlined_call_operand.vmem [shape: f32[1,384], index: 4, kind: input, shape index: {}]
  %s5 = inlined_call_operand.hbm [shape: bf16[128,384], index: 5, kind: input, shape index: {}]
  %s6 = inlined_call_operand.vmem [shape: f32[1,384], index: 6, kind: input, shape index: {}]
  %s7 = inlined_call_operand.vmem [shape: f32[8,128], index: 7, kind: output, shape index: {}]
  %s8 = sld [smem:[#allocation0]]
  $region46: #{encoder_forward_seq.1} parent=0
    _
  %s10 = ssub.s32 1, %s8
  %s11 = scalar_select 0, %s10, %s8
  %s13 = sshll.u32 %s0, 4
  %s14 = int_to_ptr.hbm [resolvable:$true] %s13
  %16 = dma.hbm_to_smem %s14, 16, [#allocation3], [#allocation2]
  %18 = dma.done [#allocation2], 16
  %19 = sfence
  $region1: #{encoder_forward_seq.1} parent=0
    #allocation4 [shape = 'u8[25600]{0}', space=vmem, size = 0x6400, scoped, tag = 'input window, operand 2, single buffered']
    #allocation5 [shape = 's32[1]{0}', space=sflag, size = 0x4, scoped, tag = 'scoped memory for encoder_forward_seq.1']
    #allocation6 [shape = 'u8[196608]{0}', space=vmem, size = 0x30000, scoped, tag = 'input window, operand 3, single buffered']
    #allocation7 [shape = 's32[1]{0}', space=sflag, size = 0x4, scoped, tag = 'scoped memory for encoder_forward_seq.1']
    #allocation8 [shape = 'u8[98304]{0}', space=vmem, size = 0x18000, scoped, tag = 'input window, operand 5, single buffered']
    %20 = vsyncpa [#allocation5], 0
    %21 = vsyncpa [#allocation7], 0
    // Predicated region
    $region2: #{encoder_forward_seq.1} parent=1 // pred_check
      _
    $region3: #{encoder_forward_seq.1} parent=1 // pred_check_branch
      %23 = sbr.rel (0) target = $region5
    $region4: #{encoder_forward_seq.1} parent=1 // pred_region
      _
    $region5: #{encoder_forward_seq.1} parent=1 // pred_fallthru
      _
    // Predicated region
    $region6: #{encoder_forward_seq.1} parent=1 // pred_check
      _
    $region7: #{encoder_forward_seq.1} parent=1 // pred_check_branch
      %25 = sbr.rel (0) target = $region9
    $region8: #{encoder_forward_seq.1} parent=1 // pred_region
      %27 = vsyncadd [#allocation5], 0
      %s28 = sshll.u32 %s2, 4
      %s29 = int_to_ptr.hbm [resolvable:$true] %s28
      %s30 = sshll.u32 [#allocation4], 4
      %s31 = int_to_ptr.vmem [resolvable:$true] %s30
      %36 = dma.hbm_to_vmem [thread:$0]  %s29, 800, %s31, [#allocation5], 16, 16, 1
    $region9: #{encoder_forward_seq.1} parent=1 // pred_fallthru
      _
    // Predicated region
    $region10: #{encoder_forward_seq.1} parent=1 // pred_check
      _
    $region11: #{encoder_forward_seq.1} parent=1 // pred_check_branch
      %38 = sbr.rel (0) target = $region13
    $region12: #{encoder_forward_seq.1} parent=1 // pred_region
      %40 = vsyncadd [#allocation7], 0
      %s41 = sshll.u32 %s3, 4
      %s42 = int_to_ptr.hbm [resolvable:$true] %s41
      %s43 = sshll.u32 [#allocation6], 4
      %s44 = int_to_ptr.vmem [resolvable:$true] %s43
      %49 = dma.hbm_to_vmem [thread:$0]  %s42, 6144, %s44, [#allocation7], 384, 384, 24
    $region13: #{encoder_forward_seq.1} parent=1 // pred_fallthru
      _
    // Predicated region
    $region14: #{encoder_forward_seq.1} parent=1 // pred_check
      _
    $region15: #{encoder_forward_seq.1} parent=1 // pred_check_branch
      %51 = sbr.rel (0) target = $region17
    $region16: #{encoder_forward_seq.1} parent=1 // pred_region
      _
    $region17: #{encoder_forward_seq.1} parent=1 // pred_fallthru
      _
    // Predicated region
    $region18: #{encoder_forward_seq.1} parent=1 // pred_check
      _
    $region19: #{encoder_forward_seq.1} parent=1 // pred_check_branch
      %53 = sbr.rel (0) target = $region21
    $region20: #{encoder_forward_seq.1} parent=1 // pred_region
      %55 = vsyncadd [#allocation7], 0
      %s56 = sshll.u32 %s5, 4
      %s57 = int_to_ptr.hbm [resolvable:$true] %s56
      %s58 = sshll.u32 [#allocation8], 4
      %s59 = int_to_ptr.vmem [resolvable:$true] %s58
      %64 = dma.hbm_to_vmem [thread:$0]  %s57, 3072, %s59, [#allocation7], 192, 192, 12
    $region21: #{encoder_forward_seq.1} parent=1 // pred_fallthru
      _
    // Predicated region
    $region22: #{encoder_forward_seq.1} parent=1 // pred_check
      _
    $region23: #{encoder_forward_seq.1} parent=1 // pred_check_branch
      %66 = sbr.rel (0) target = $region25
    $region24: #{encoder_forward_seq.1} parent=1 // pred_region
      _
    $region25: #{encoder_forward_seq.1} parent=1 // pred_fallthru
      _
    // Predicated region
    $region26: #{encoder_forward_seq.1} parent=1 // pred_check
      _
    $region27: #{encoder_forward_seq.1} parent=1 // pred_check_branch
      %68 = sbr.rel (0) target = $region29
    $region28: #{encoder_forward_seq.1} parent=1 // pred_region
      %70 = dma.done [#allocation5], 800
    $region29: #{encoder_forward_seq.1} parent=1 // pred_fallthru
      _
    // Predicated region
    $region30: #{encoder_forward_seq.1} parent=1 // pred_check
      _
    $region31: #{encoder_forward_seq.1} parent=1 // pred_check_branch
      %72 = sbr.rel (0) target = $region33
    $region32: #{encoder_forward_seq.1} parent=1 // pred_region
      %74 = dma.done [#allocation7], 6144
    $region33: #{encoder_forward_seq.1} parent=1 // pred_fallthru
      _
    // Predicated region
    $region34: #{encoder_forward_seq.1} parent=1 // pred_check
      _
    $region35: #{encoder_forward_seq.1} parent=1 // pred_check_branch
      %76 = sbr.rel (0) target = $region37
    $region36: #{encoder_forward_seq.1} parent=1 // pred_region
      %78 = dma.done [#allocation7], 3072
    $region37: #{encoder_forward_seq.1} parent=1 // pred_fallthru
      _
    %v79 = vld [vmem:[%s1] sm:$0x1]
    %s80 = sld [smem:[#allocation3]]
    %s81 = scalar_lea.vmem [#allocation4], %s80
    %v82 = vld [vmem:[%s81] sm:$0x1]
    %v83 = vld [vmem:[#allocation6] sm:$0xff]
    %v84 = vld [vmem:[#allocation6 + $0x8] sm:$0xff]
    %v85 = vld [vmem:[#allocation6 + $0x10] sm:$0xff]
    %v86 = vld [vmem:[#allocation6 + $0x18] sm:$0xff]
    %v87 = vld [vmem:[#allocation6 + $0x20] sm:$0xff]
    %v88 = vld [vmem:[#allocation6 + $0x28] sm:$0xff]
    %v89 = vld [vmem:[#allocation6 + $0x30] sm:$0xff]
    %v90 = vld [vmem:[#allocation6 + $0x38] sm:$0xff]
    %v91 = vld [vmem:[#allocation6 + $0x40] sm:$0xff]
    %v92 = vld [vmem:[#allocation6 + $0x48] sm:$0xff]
    %v93 = vld [vmem:[#allocation6 + $0x50] sm:$0xff]
    %v94 = vld [vmem:[#allocation6 + $0x58] sm:$0xff]
    %v95 = vld [vmem:[#allocation6 + $0x60] sm:$0xff]
    %v96 = vld [vmem:[#allocation6 + $0x68] sm:$0xff]
    %v97 = vld [vmem:[#allocation6 + $0x70] sm:$0xff]
    %v98 = vld [vmem:[#allocation6 + $0x78] sm:$0xff]
    %v99 = vld [vmem:[#allocation6 + $0x80] sm:$0xff]
    %v100 = vld [vmem:[#allocation6 + $0x88] sm:$0xff]
    %v101 = vld [vmem:[#allocation6 + $0x90] sm:$0xff]
    %v102 = vld [vmem:[#allocation6 + $0x98] sm:$0xff]
    %v103 = vld [vmem:[#allocation6 + $0xa0] sm:$0xff]
    %v104 = vld [vmem:[#allocation6 + $0xa8] sm:$0xff]
    %v105 = vld [vmem:[#allocation6 + $0xb0] sm:$0xff]
    %v106 = vld [vmem:[#allocation6 + $0xb8] sm:$0xff]
    %v107 = vld [vmem:[#allocation6 + $0xc0] sm:$0xff]
    %v108 = vld [vmem:[#allocation6 + $0xc8] sm:$0xff]
    %v109 = vld [vmem:[#allocation6 + $0xd0] sm:$0xff]
    %v110 = vld [vmem:[#allocation6 + $0xd8] sm:$0xff]
    %v111 = vld [vmem:[#allocation6 + $0xe0] sm:$0xff]
    %v112 = vld [vmem:[#allocation6 + $0xe8] sm:$0xff]
    %v113 = vld [vmem:[#allocation6 + $0xf0] sm:$0xff]
    %v114 = vld [vmem:[#allocation6 + $0xf8] sm:$0xff]
    %v115 = vld [vmem:[#allocation6 + $0x100] sm:$0xff]
    %v116 = vld [vmem:[#allocation6 + $0x108] sm:$0xff]
    %v117 = vld [vmem:[#allocation6 + $0x110] sm:$0xff]
    %v118 = vld [vmem:[#allocation6 + $0x118] sm:$0xff]
    %v119 = vld [vmem:[#allocation6 + $0x120] sm:$0xff]
    %v120 = vld [vmem:[#allocation6 + $0x128] sm:$0xff]
    %v121 = vld [vmem:[#allocation6 + $0x130] sm:$0xff]
    %v122 = vld [vmem:[#allocation6 + $0x138] sm:$0xff]
    %v123 = vld [vmem:[#allocation6 + $0x140] sm:$0xff]
    %v124 = vld [vmem:[#allocation6 + $0x148] sm:$0xff]
    %v125 = vld [vmem:[#allocation6 + $0x150] sm:$0xff]
    %v126 = vld [vmem:[#allocation6 + $0x158] sm:$0xff]
    %v127 = vld [vmem:[#allocation6 + $0x160] sm:$0xff]
    %v128 = vld [vmem:[#allocation6 + $0x168] sm:$0xff]
    %v129 = vld [vmem:[#allocation6 + $0x170] sm:$0xff]
    %v130 = vld [vmem:[#allocation6 + $0x178] sm:$0xff]
    %v131 = vld [vmem:[%s4] sm:$0x7]
    %v133 = vperm.slane %v131, 0
    %v134 = vperm.slane %v131, 1
    %v135 = vperm.slane %v131, 2
    %139 = vmatpush.msra.mxu0 %v128
    %140 = vmatpush.msra.mxu0 %v125
    %141 = vmatpush.msra.mxu0 %v122
    %142 = vmatpush.msra.mxu0 %v119
    %143 = vmatpush.msra.mxu0 %v116
    %144 = vmatpush.msra.mxu0 %v113
    %145 = vmatpush.msra.mxu0 %v110
    %146 = vmatpush.msra.mxu0 %v107
    %147 = vmatpush.msra.mxu0 %v104
    %148 = vmatpush.msra.mxu0 %v101
    %149 = vmatpush.msra.mxu0 %v98
    %150 = vmatpush.msra.mxu0 %v95
    %151 = vmatpush.msra.mxu0 %v92
    %152 = vmatpush.msra.mxu0 %v89
    %153 = vmatpush.msra.mxu0 %v86
    %154 = vmatpush.msra.mxu0 %v83
    %155 = vmatmul.f32.gmra.mxu0 %v82
    %v156 = vpop.f32.mrf.mxu0
    %v157 = vadd.f32 %v133, %v156
    %158 = vdwg.mxu0
    %159 = vmatpush.msra.mxu0 %v129
    %160 = vmatpush.msra.mxu0 %v126
    %161 = vmatpush.msra.mxu0 %v123
    %162 = vmatpush.msra.mxu0 %v120
    %163 = vmatpush.msra.mxu0 %v117
    %164 = vmatpush.msra.mxu0 %v114
    %165 = vmatpush.msra.mxu0 %v111
    %166 = vmatpush.msra.mxu0 %v108
    %167 = vmatpush.msra.mxu0 %v105
    %168 = vmatpush.msra.mxu0 %v102
    %169 = vmatpush.msra.mxu0 %v99
    %170 = vmatpush.msra.mxu0 %v96
    %171 = vmatpush.msra.mxu0 %v93
    %172 = vmatpush.msra.mxu0 %v90
    %173 = vmatpush.msra.mxu0 %v87
    %174 = vmatpush.msra.mxu0 %v84
    %175 = vmatmul.f32.gmra.mxu0 %v82
    %v176 = vpop.f32.mrf.mxu0
    %v177 = vadd.f32 %v134, %v176
    %178 = vdwg.mxu0
    %179 = vmatpush.msra.mxu0 %v130
    %180 = vmatpush.msra.mxu0 %v127
    %181 = vmatpush.msra.mxu0 %v124
    %182 = vmatpush.msra.mxu0 %v121
    %183 = vmatpush.msra.mxu0 %v118
    %184 = vmatpush.msra.mxu0 %v115
    %185 = vmatpush.msra.mxu0 %v112
    %186 = vmatpush.msra.mxu0 %v109
    %187 = vmatpush.msra.mxu0 %v106
    %188 = vmatpush.msra.mxu0 %v103
    %189 = vmatpush.msra.mxu0 %v100
    %190 = vmatpush.msra.mxu0 %v97
    %191 = vmatpush.msra.mxu0 %v94
    %192 = vmatpush.msra.mxu0 %v91
    %193 = vmatpush.msra.mxu0 %v88
    %194 = vmatpush.msra.mxu0 %v85
    %195 = vmatmul.f32.gmra.mxu0 %v82
    %v196 = vpop.f32.mrf.mxu0
    %v197 = vadd.f32 %v135, %v196
    %198 = vdwg.mxu0
    %v199 = vpack.c.bf16 %v79, %v79
    %v200 = vld [vmem:[#allocation8] sm:$0xff]
    %v201 = vld [vmem:[#allocation8 + $0x8] sm:$0xf]
    %v202 = vld [vmem:[#allocation8 + $0xc] sm:$0xff]
    %v203 = vld [vmem:[#allocation8 + $0x14] sm:$0xf]
    %v204 = vld [vmem:[#allocation8 + $0x18] sm:$0xff]
    %v205 = vld [vmem:[#allocation8 + $0x20] sm:$0xf]
    %v206 = vld [vmem:[#allocation8 + $0x24] sm:$0xff]
    %v207 = vld [vmem:[#allocation8 + $0x2c] sm:$0xf]
    %v208 = vld [vmem:[#allocation8 + $0x30] sm:$0xff]
    %v209 = vld [vmem:[#allocation8 + $0x38] sm:$0xf]
    %v210 = vld [vmem:[#allocation8 + $0x3c] sm:$0xff]
    %v211 = vld [vmem:[#allocation8 + $0x44] sm:$0xf]
    %v212 = vld [vmem:[#allocation8 + $0x48] sm:$0xff]
    %v213 = vld [vmem:[#allocation8 + $0x50] sm:$0xf]
    %v214 = vld [vmem:[#allocation8 + $0x54] sm:$0xff]
    %v215 = vld [vmem:[#allocation8 + $0x5c] sm:$0xf]
    %v216 = vld [vmem:[#allocation8 + $0x60] sm:$0xff]
    %v217 = vld [vmem:[#allocation8 + $0x68] sm:$0xf]
    %v218 = vld [vmem:[#allocation8 + $0x6c] sm:$0xff]
    %v219 = vld [vmem:[#allocation8 + $0x74] sm:$0xf]
    %v220 = vld [vmem:[#allocation8 + $0x78] sm:$0xff]
    %v221 = vld [vmem:[#allocation8 + $0x80] sm:$0xf]
    %v222 = vld [vmem:[#allocation8 + $0x84] sm:$0xff]
    %v223 = vld [vmem:[#allocation8 + $0x8c] sm:$0xf]
    %v224 = vld [vmem:[#allocation8 + $0x90] sm:$0xff]
    %v225 = vld [vmem:[#allocation8 + $0x98] sm:$0xf]
    %v226 = vld [vmem:[#allocation8 + $0x9c] sm:$0xff]
    %v227 = vld [vmem:[#allocation8 + $0xa4] sm:$0xf]
    %v228 = vld [vmem:[#allocation8 + $0xa8] sm:$0xff]
    %v229 = vld [vmem:[#allocation8 + $0xb0] sm:$0xf]
    %v230 = vld [vmem:[#allocation8 + $0xb4] sm:$0xff]
    %v231 = vld [vmem:[#allocation8 + $0xbc] sm:$0xf]
    %v232 = vld [vmem:[%s6] sm:$0x7]
    %v265 = vunpack.c.l.b16 %v200
    %v266 = vunpack.c.h.b16 %v200
    %v267 = vunpack.c.l.b16 %v201
    %v268 = vunpack.c.l.b16 %v202
    %v269 = vunpack.c.h.b16 %v202
    %v270 = vunpack.c.l.b16 %v203
    %v271 = vunpack.c.l.b16 %v204
    %v272 = vunpack.c.h.b16 %v204
    %v273 = vunpack.c.l.b16 %v205
    %v274 = vunpack.c.l.b16 %v206
    %v275 = vunpack.c.h.b16 %v206
    %v276 = vunpack.c.l.b16 %v207
    %v277 = vunpack.c.l.b16 %v208
    %v278 = vunpack.c.h.b16 %v208
    %v279 = vunpack.c.l.b16 %v209
    %v280 = vunpack.c.l.b16 %v210
    %v281 = vunpack.c.h.b16 %v210
    %v282 = vunpack.c.l.b16 %v211
    %v283 = vunpack.c.l.b16 %v212
    %v284 = vunpack.c.h.b16 %v212
    %v285 = vunpack.c.l.b16 %v213
    %v286 = vunpack.c.l.b16 %v214
    %v287 = vunpack.c.h.b16 %v214
    %v288 = vunpack.c.l.b16 %v215
    %v289 = vunpack.c.l.b16 %v216
    %v290 = vunpack.c.h.b16 %v216
    %v291 = vunpack.c.l.b16 %v217
    %v292 = vunpack.c.l.b16 %v218
    %v293 = vunpack.c.h.b16 %v218
    %v294 = vunpack.c.l.b16 %v219
    %v295 = vunpack.c.l.b16 %v220
    %v296 = vunpack.c.h.b16 %v220
    %v297 = vunpack.c.l.b16 %v221
    %v298 = vunpack.c.l.b16 %v222
    %v299 = vunpack.c.h.b16 %v222
    %v300 = vunpack.c.l.b16 %v223
    %v301 = vunpack.c.l.b16 %v224
    %v302 = vunpack.c.h.b16 %v224
    %v303 = vunpack.c.l.b16 %v225
    %v304 = vunpack.c.l.b16 %v226
    %v305 = vunpack.c.h.b16 %v226
    %v306 = vunpack.c.l.b16 %v227
    %v307 = vunpack.c.l.b16 %v228
    %v308 = vunpack.c.h.b16 %v228
    %v309 = vunpack.c.l.b16 %v229
    %v310 = vunpack.c.l.b16 %v230
    %v311 = vunpack.c.h.b16 %v230
    %v312 = vunpack.c.l.b16 %v231
    %v313 = vpack.c.b16 %v268, %v265
    %v314 = vpack.c.b16 %v269, %v266
    %v315 = vpack.c.b16 %v270, %v267
    %v316 = vpack.c.b16 %v274, %v271
    %v317 = vpack.c.b16 %v275, %v272
    %v318 = vpack.c.b16 %v276, %v273
    %v319 = vpack.c.b16 %v280, %v277
    %v320 = vpack.c.b16 %v281, %v278
    %v321 = vpack.c.b16 %v282, %v279
    %v322 = vpack.c.b16 %v286, %v283
    %v323 = vpack.c.b16 %v287, %v284
    %v324 = vpack.c.b16 %v288, %v285
    %v325 = vpack.c.b16 %v292, %v289
    %v326 = vpack.c.b16 %v293, %v290
    %v327 = vpack.c.b16 %v294, %v291
    %v328 = vpack.c.b16 %v298, %v295
    %v329 = vpack.c.b16 %v299, %v296
    %v330 = vpack.c.b16 %v300, %v297
    %v331 = vpack.c.b16 %v304, %v301
    %v332 = vpack.c.b16 %v305, %v302
    %v333 = vpack.c.b16 %v306, %v303
    %v334 = vpack.c.b16 %v310, %v307
    %v335 = vpack.c.b16 %v311, %v308
    %v336 = vpack.c.b16 %v312, %v309
    %v362 = vperm.slane %v232, 0
    %v363 = vperm.slane %v232, 1
    %v364 = vperm.slane %v232, 2
    %368 = vmatpush.bf16.msra.mxu0 %v334
    %369 = vmatpush.bf16.msra.mxu0 %v331
    %370 = vmatpush.bf16.msra.mxu0 %v328
    %371 = vmatpush.bf16.msra.mxu0 %v325
    %372 = vmatpush.bf16.msra.mxu0 %v322
    %373 = vmatpush.bf16.msra.mxu0 %v319
    %374 = vmatpush.bf16.msra.mxu0 %v316
    %375 = vmatpush.bf16.msra.mxu0 %v313
    %376 = vmatmul.bf16.gmra.mxu0 %v199
    %v377 = vpop.f32.mrf.mxu0
    %v378 = vadd.f32 %v362, %v377
    %v379 = vpop.f32.mrf.mxu0
    %380 = vdwg.mxu0
    %381 = vmatpush.bf16.msra.mxu0 %v335
    %382 = vmatpush.bf16.msra.mxu0 %v332
    %383 = vmatpush.bf16.msra.mxu0 %v329
    %384 = vmatpush.bf16.msra.mxu0 %v326
    %385 = vmatpush.bf16.msra.mxu0 %v323
    %386 = vmatpush.bf16.msra.mxu0 %v320
    %387 = vmatpush.bf16.msra.mxu0 %v317
    %388 = vmatpush.bf16.msra.mxu0 %v314
    %389 = vmatmul.bf16.gmra.mxu0 %v199
    %v390 = vpop.f32.mrf.mxu0
    %v391 = vadd.f32 %v363, %v390
    %v392 = vpop.f32.mrf.mxu0
    %393 = vdwg.mxu0
    %394 = vmatpush.bf16.msra.mxu0 %v336
    %395 = vmatpush.bf16.msra.mxu0 %v333
    %396 = vmatpush.bf16.msra.mxu0 %v330
    %397 = vmatpush.bf16.msra.mxu0 %v327
    %398 = vmatpush.bf16.msra.mxu0 %v324
    %399 = vmatpush.bf16.msra.mxu0 %v321
    %400 = vmatpush.bf16.msra.mxu0 %v318
    %401 = vmatpush.bf16.msra.mxu0 %v315
    %402 = vmatmul.bf16.gmra.mxu0 %v199
    %v403 = vpop.f32.mrf.mxu0
    %v404 = vadd.f32 %v364, %v403
    %v405 = vpop.f32.mrf.mxu0
    %406 = vdwg.mxu0
    %v407 = vadd.f32 %v157, %v378
    %v408 = vxor.u32 %v407, 2147483648
    %v409 = vmul.f32 %v408, 1.442695
    %v410 = vpow.pop %v409
    %v411 = vadd.f32 %v410, 1.0
    %v412 = vrcp.pop %v411
    %v413 = vmul.f32 %v411, %v412
    %v414 = vsub.f32 1.0, %v413
    %v415 = vmul.f32 %v412, %v414
    %v416 = vadd.f32 %v412, %v415
    %vm417 = vweird.f32 %v411
    %vm418 = vweird.f32 %v412
    %vm419 = vmor %vm417, %vm418
    %v420 = vsel %vm419, %v412, %v416
    %v421 = vand.u32 2147483647, %v411
    %vm422 = vcmp.eq.f32.partialorder %v421, 8.507059e+37
    %v423 = vand.u32 %v411, 2147483648
    %v424 = vor.u32 1.1754944e-38, %v423
    %v425 = vsel %vm422, %v424, %v420
    %v426 = vmul.f32 1.0, %v425
    %v427 = vadd.f32 %v177, %v391
    %v428 = vxor.u32 %v427, 2147483648
    %v429 = vmul.f32 %v428, 1.442695
    %v430 = vpow.pop %v429
    %v431 = vadd.f32 %v430, 1.0
    %v432 = vrcp.pop %v431
    %v433 = vmul.f32 %v431, %v432
    %v434 = vsub.f32 1.0, %v433
    %v435 = vmul.f32 %v432, %v434
    %v436 = vadd.f32 %v432, %v435
    %vm437 = vweird.f32 %v431
    %vm438 = vweird.f32 %v432
    %vm439 = vmor %vm437, %vm438
    %v440 = vsel %vm439, %v432, %v436
    %v441 = vand.u32 2147483647, %v431
    %vm442 = vcmp.eq.f32.partialorder %v441, 8.507059e+37
    %v443 = vand.u32 %v431, 2147483648
    %v444 = vor.u32 1.1754944e-38, %v443
    %v445 = vsel %vm442, %v444, %v440
    %v446 = vmul.f32 1.0, %v445
    %v447 = vmul.f32 %v426, %v404
    %v448 = vadd.f32 %v197, %v447
    %v449 = vtanh.pop %v448
    %v450 = vsub.f32 1.0, %v446
    %v451 = vmul.f32 %v450, %v449
    %v452 = vmul.f32 %v446, %v79
    %v453 = vadd.f32 %v451, %v452
    %s454 = sld [smem:[#allocation3 + $0x1]]
    %s455 = scalar_lea.vmem [#allocation4], %s454
    %v456 = vld [vmem:[%s455] sm:$0x1]
    %457 = vmatpush.msra.mxu0 %v128
    %458 = vmatpush.msra.mxu0 %v125
    %459 = vmatpush.msra.mxu0 %v122
    %460 = vmatpush.msra.mxu0 %v119
    %461 = vmatpush.msra.mxu0 %v116
    %462 = vmatpush.msra.mxu0 %v113
    %463 = vmatpush.msra.mxu0 %v110
    %464 = vmatpush.msra.mxu0 %v107
    %465 = vmatpush.msra.mxu0 %v104
    %466 = vmatpush.msra.mxu0 %v101
    %467 = vmatpush.msra.mxu0 %v98
    %468 = vmatpush.msra.mxu0 %v95
    %469 = vmatpush.msra.mxu0 %v92
    %470 = vmatpush.msra.mxu0 %v89
    %471 = vmatpush.msra.mxu0 %v86
    %472 = vmatpush.msra.mxu0 %v83
    %473 = vmatmul.f32.gmra.mxu0 %v456
    %v474 = vpop.f32.mrf.mxu0
    %v475 = vadd.f32 %v133, %v474
    %476 = vdwg.mxu0
    %477 = vmatpush.msra.mxu0 %v129
    %478 = vmatpush.msra.mxu0 %v126
    %479 = vmatpush.msra.mxu0 %v123
    %480 = vmatpush.msra.mxu0 %v120
    %481 = vmatpush.msra.mxu0 %v117
    %482 = vmatpush.msra.mxu0 %v114
    %483 = vmatpush.msra.mxu0 %v111
    %484 = vmatpush.msra.mxu0 %v108
    %485 = vmatpush.msra.mxu0 %v105
    %486 = vmatpush.msra.mxu0 %v102
    %487 = vmatpush.msra.mxu0 %v99
    %488 = vmatpush.msra.mxu0 %v96
    %489 = vmatpush.msra.mxu0 %v93
    %490 = vmatpush.msra.mxu0 %v90
    %491 = vmatpush.msra.mxu0 %v87
    %492 = vmatpush.msra.mxu0 %v84
    %493 = vmatmul.f32.gmra.mxu0 %v456
    %v494 = vpop.f32.mrf.mxu0
    %v495 = vadd.f32 %v134, %v494
    %496 = vdwg.mxu0
    %497 = vmatpush.msra.mxu0 %v130
    %498 = vmatpush.msra.mxu0 %v127
    %499 = vmatpush.msra.mxu0 %v124
    %500 = vmatpush.msra.mxu0 %v121
    %501 = vmatpush.msra.mxu0 %v118
    %502 = vmatpush.msra.mxu0 %v115
    %503 = vmatpush.msra.mxu0 %v112
    %504 = vmatpush.msra.mxu0 %v109
    %505 = vmatpush.msra.mxu0 %v106
    %506 = vmatpush.msra.mxu0 %v103
    %507 = vmatpush.msra.mxu0 %v100
    %508 = vmatpush.msra.mxu0 %v97
    %509 = vmatpush.msra.mxu0 %v94
    %510 = vmatpush.msra.mxu0 %v91
    %511 = vmatpush.msra.mxu0 %v88
    %512 = vmatpush.msra.mxu0 %v85
    %513 = vmatmul.f32.gmra.mxu0 %v456
    %v514 = vpop.f32.mrf.mxu0
    %v515 = vadd.f32 %v135, %v514
    %516 = vdwg.mxu0
    %v517 = vpack.c.bf16 %v453, %v453
    %518 = vmatpush.bf16.msra.mxu0 %v334
    %519 = vmatpush.bf16.msra.mxu0 %v331
    %520 = vmatpush.bf16.msra.mxu0 %v328
    %521 = vmatpush.bf16.msra.mxu0 %v325
    %522 = vmatpush.bf16.msra.mxu0 %v322
    %523 = vmatpush.bf16.msra.mxu0 %v319
    %524 = vmatpush.bf16.msra.mxu0 %v316
    %525 = vmatpush.bf16.msra.mxu0 %v313
    %526 = vmatmul.bf16.gmra.mxu0 %v517
    %v527 = vpop.f32.mrf.mxu0
    %v528 = vadd.f32 %v362, %v527
    %v529 = vpop.f32.mrf.mxu0
    %530 = vdwg.mxu0
    %531 = vmatpush.bf16.msra.mxu0 %v335
    %532 = vmatpush.bf16.msra.mxu0 %v332
    %533 = vmatpush.bf16.msra.mxu0 %v329
    %534 = vmatpush.bf16.msra.mxu0 %v326
    %535 = vmatpush.bf16.msra.mxu0 %v323
    %536 = vmatpush.bf16.msra.mxu0 %v320
    %537 = vmatpush.bf16.msra.mxu0 %v317
    %538 = vmatpush.bf16.msra.mxu0 %v314
    %539 = vmatmul.bf16.gmra.mxu0 %v517
    %v540 = vpop.f32.mrf.mxu0
    %v541 = vadd.f32 %v363, %v540
    %v542 = vpop.f32.mrf.mxu0
    %543 = vdwg.mxu0
    %544 = vmatpush.bf16.msra.mxu0 %v336
    %545 = vmatpush.bf16.msra.mxu0 %v333
    %546 = vmatpush.bf16.msra.mxu0 %v330
    %547 = vmatpush.bf16.msra.mxu0 %v327
    %548 = vmatpush.bf16.msra.mxu0 %v324
    %549 = vmatpush.bf16.msra.mxu0 %v321
    %550 = vmatpush.bf16.msra.mxu0 %v318
    %551 = vmatpush.bf16.msra.mxu0 %v315
    %552 = vmatmul.bf16.gmra.mxu0 %v517
    %v553 = vpop.f32.mrf.mxu0
    %v554 = vadd.f32 %v364, %v553
    %v555 = vpop.f32.mrf.mxu0
    %556 = vdwg.mxu0
    %v557 = vadd.f32 %v475, %v528
    %v558 = vxor.u32 %v557, 2147483648
    %v559 = vmul.f32 %v558, 1.442695
    %v560 = vpow.pop %v559
    %v561 = vadd.f32 %v560, 1.0
    %v562 = vrcp.pop %v561
    %v563 = vmul.f32 %v561, %v562
    %v564 = vsub.f32 1.0, %v563
    %v565 = vmul.f32 %v562, %v564
    %v566 = vadd.f32 %v562, %v565
    %vm567 = vweird.f32 %v561
    %vm568 = vweird.f32 %v562
    %vm569 = vmor %vm567, %vm568
    %v570 = vsel %vm569, %v562, %v566
    %v571 = vand.u32 2147483647, %v561
    %vm572 = vcmp.eq.f32.partialorder %v571, 8.507059e+37
    %v573 = vand.u32 %v561, 2147483648
    %v574 = vor.u32 1.1754944e-38, %v573
    %v575 = vsel %vm572, %v574, %v570
    %v576 = vmul.f32 1.0, %v575
    %v577 = vadd.f32 %v495, %v541
    %v578 = vxor.u32 %v577, 2147483648
    %v579 = vmul.f32 %v578, 1.442695
    %v580 = vpow.pop %v579
    %v581 = vadd.f32 %v580, 1.0
    %v582 = vrcp.pop %v581
    %v583 = vmul.f32 %v581, %v582
    %v584 = vsub.f32 1.0, %v583
    %v585 = vmul.f32 %v582, %v584
    %v586 = vadd.f32 %v582, %v585
    %vm587 = vweird.f32 %v581
    %vm588 = vweird.f32 %v582
    %vm589 = vmor %vm587, %vm588
    %v590 = vsel %vm589, %v582, %v586
    %v591 = vand.u32 2147483647, %v581
    %vm592 = vcmp.eq.f32.partialorder %v591, 8.507059e+37
    %v593 = vand.u32 %v581, 2147483648
    %v594 = vor.u32 1.1754944e-38, %v593
    %v595 = vsel %vm592, %v594, %v590
    %v596 = vmul.f32 1.0, %v595
    %v597 = vmul.f32 %v576, %v554
    %v598 = vadd.f32 %v515, %v597
    %v599 = vtanh.pop %v598
    %v600 = vsub.f32 1.0, %v596
    %v601 = vmul.f32 %v600, %v599
    %v602 = vmul.f32 %v596, %v453
    %v603 = vadd.f32 %v601, %v602
    %s604 = sld [smem:[#allocation3 + $0x2]]
    %s605 = scalar_lea.vmem [#allocation4], %s604
    %v606 = vld [vmem:[%s605] sm:$0x1]
    %607 = vmatpush.msra.mxu0 %v128
    %608 = vmatpush.msra.mxu0 %v125
    %609 = vmatpush.msra.mxu0 %v122
    %610 = vmatpush.msra.mxu0 %v119
    %611 = vmatpush.msra.mxu0 %v116
    %612 = vmatpush.msra.mxu0 %v113
    %613 = vmatpush.msra.mxu0 %v110
    %614 = vmatpush.msra.mxu0 %v107
    %615 = vmatpush.msra.mxu0 %v104
    %616 = vmatpush.msra.mxu0 %v101
    %617 = vmatpush.msra.mxu0 %v98
    %618 = vmatpush.msra.mxu0 %v95
    %619 = vmatpush.msra.mxu0 %v92
    %620 = vmatpush.msra.mxu0 %v89
    %621 = vmatpush.msra.mxu0 %v86
    %622 = vmatpush.msra.mxu0 %v83
    %623 = vmatmul.f32.gmra.mxu0 %v606
    %v624 = vpop.f32.mrf.mxu0
    %v625 = vadd.f32 %v133, %v624
    %626 = vdwg.mxu0
    %627 = vmatpush.msra.mxu0 %v129
    %628 = vmatpush.msra.mxu0 %v126
    %629 = vmatpush.msra.mxu0 %v123
    %630 = vmatpush.msra.mxu0 %v120
    %631 = vmatpush.msra.mxu0 %v117
    %632 = vmatpush.msra.mxu0 %v114
    %633 = vmatpush.msra.mxu0 %v111
    %634 = vmatpush.msra.mxu0 %v108
    %635 = vmatpush.msra.mxu0 %v105
    %636 = vmatpush.msra.mxu0 %v102
    %637 = vmatpush.msra.mxu0 %v99
    %638 = vmatpush.msra.mxu0 %v96
    %639 = vmatpush.msra.mxu0 %v93
    %640 = vmatpush.msra.mxu0 %v90
    %641 = vmatpush.msra.mxu0 %v87
    %642 = vmatpush.msra.mxu0 %v84
    %643 = vmatmul.f32.gmra.mxu0 %v606
    %v644 = vpop.f32.mrf.mxu0
    %v645 = vadd.f32 %v134, %v644
    %646 = vdwg.mxu0
    %647 = vmatpush.msra.mxu0 %v130
    %648 = vmatpush.msra.mxu0 %v127
    %649 = vmatpush.msra.mxu0 %v124
    %650 = vmatpush.msra.mxu0 %v121
    %651 = vmatpush.msra.mxu0 %v118
    %652 = vmatpush.msra.mxu0 %v115
    %653 = vmatpush.msra.mxu0 %v112
    %654 = vmatpush.msra.mxu0 %v109
    %655 = vmatpush.msra.mxu0 %v106
    %656 = vmatpush.msra.mxu0 %v103
    %657 = vmatpush.msra.mxu0 %v100
    %658 = vmatpush.msra.mxu0 %v97
    %659 = vmatpush.msra.mxu0 %v94
    %660 = vmatpush.msra.mxu0 %v91
    %661 = vmatpush.msra.mxu0 %v88
    %662 = vmatpush.msra.mxu0 %v85
    %663 = vmatmul.f32.gmra.mxu0 %v606
    %v664 = vpop.f32.mrf.mxu0
    %v665 = vadd.f32 %v135, %v664
    %666 = vdwg.mxu0
    %v667 = vpack.c.bf16 %v603, %v603
    %668 = vmatpush.bf16.msra.mxu0 %v334
    %669 = vmatpush.bf16.msra.mxu0 %v331
    %670 = vmatpush.bf16.msra.mxu0 %v328
    %671 = vmatpush.bf16.msra.mxu0 %v325
    %672 = vmatpush.bf16.msra.mxu0 %v322
    %673 = vmatpush.bf16.msra.mxu0 %v319
    %674 = vmatpush.bf16.msra.mxu0 %v316
    %675 = vmatpush.bf16.msra.mxu0 %v313
    %676 = vmatmul.bf16.gmra.mxu0 %v667
    %v677 = vpop.f32.mrf.mxu0
    %v678 = vadd.f32 %v362, %v677
    %v679 = vpop.f32.mrf.mxu0
    %680 = vdwg.mxu0
    %681 = vmatpush.bf16.msra.mxu0 %v335
    %682 = vmatpush.bf16.msra.mxu0 %v332
    %683 = vmatpush.bf16.msra.mxu0 %v329
    %684 = vmatpush.bf16.msra.mxu0 %v326
    %685 = vmatpush.bf16.msra.mxu0 %v323
    %686 = vmatpush.bf16.msra.mxu0 %v320
    %687 = vmatpush.bf16.msra.mxu0 %v317
    %688 = vmatpush.bf16.msra.mxu0 %v314
    %689 = vmatmul.bf16.gmra.mxu0 %v667
    %v690 = vpop.f32.mrf.mxu0
    %v691 = vadd.f32 %v363, %v690
    %v692 = vpop.f32.mrf.mxu0
    %693 = vdwg.mxu0
    %694 = vmatpush.bf16.msra.mxu0 %v336
    %695 = vmatpush.bf16.msra.mxu0 %v333
    %696 = vmatpush.bf16.msra.mxu0 %v330
    %697 = vmatpush.bf16.msra.mxu0 %v327
    %698 = vmatpush.bf16.msra.mxu0 %v324
    %699 = vmatpush.bf16.msra.mxu0 %v321
    %700 = vmatpush.bf16.msra.mxu0 %v318
    %701 = vmatpush.bf16.msra.mxu0 %v315
    %702 = vmatmul.bf16.gmra.mxu0 %v667
    %v703 = vpop.f32.mrf.mxu0
    %v704 = vadd.f32 %v364, %v703
    %v705 = vpop.f32.mrf.mxu0
    %706 = vdwg.mxu0
    %v707 = vadd.f32 %v625, %v678
    %v708 = vxor.u32 %v707, 2147483648
    %v709 = vmul.f32 %v708, 1.442695
    %v710 = vpow.pop %v709
    %v711 = vadd.f32 %v710, 1.0
    %v712 = vrcp.pop %v711
    %v713 = vmul.f32 %v711, %v712
    %v714 = vsub.f32 1.0, %v713
    %v715 = vmul.f32 %v712, %v714
    %v716 = vadd.f32 %v712, %v715
    %vm717 = vweird.f32 %v711
    %vm718 = vweird.f32 %v712
    %vm719 = vmor %vm717, %vm718
    %v720 = vsel %vm719, %v712, %v716
    %v721 = vand.u32 2147483647, %v711
    %vm722 = vcmp.eq.f32.partialorder %v721, 8.507059e+37
    %v723 = vand.u32 %v711, 2147483648
    %v724 = vor.u32 1.1754944e-38, %v723
    %v725 = vsel %vm722, %v724, %v720
    %v726 = vmul.f32 1.0, %v725
    %v727 = vadd.f32 %v645, %v691
    %v728 = vxor.u32 %v727, 2147483648
    %v729 = vmul.f32 %v728, 1.442695
    %v730 = vpow.pop %v729
    %v731 = vadd.f32 %v730, 1.0
    %v732 = vrcp.pop %v731
    %v733 = vmul.f32 %v731, %v732
    %v734 = vsub.f32 1.0, %v733
    %v735 = vmul.f32 %v732, %v734
    %v736 = vadd.f32 %v732, %v735
    %vm737 = vweird.f32 %v731
    %vm738 = vweird.f32 %v732
    %vm739 = vmor %vm737, %vm738
    %v740 = vsel %vm739, %v732, %v736
    %v741 = vand.u32 2147483647, %v731
    %vm742 = vcmp.eq.f32.partialorder %v741, 8.507059e+37
    %v743 = vand.u32 %v731, 2147483648
    %v744 = vor.u32 1.1754944e-38, %v743
    %v745 = vsel %vm742, %v744, %v740
    %v746 = vmul.f32 1.0, %v745
    %v747 = vmul.f32 %v726, %v704
    %v748 = vadd.f32 %v665, %v747
    %v749 = vtanh.pop %v748
    %v750 = vsub.f32 1.0, %v746
    %v751 = vmul.f32 %v750, %v749
    %v752 = vmul.f32 %v746, %v603
    %v753 = vadd.f32 %v751, %v752
    %s754 = sld [smem:[#allocation3 + $0x3]]
    %s755 = scalar_lea.vmem [#allocation4], %s754
    %v756 = vld [vmem:[%s755] sm:$0x1]
    %757 = vmatpush.msra.mxu0 %v128
    %758 = vmatpush.msra.mxu0 %v125
    %759 = vmatpush.msra.mxu0 %v122
    %760 = vmatpush.msra.mxu0 %v119
    %761 = vmatpush.msra.mxu0 %v116
    %762 = vmatpush.msra.mxu0 %v113
    %763 = vmatpush.msra.mxu0 %v110
    %764 = vmatpush.msra.mxu0 %v107
    %765 = vmatpush.msra.mxu0 %v104
    %766 = vmatpush.msra.mxu0 %v101
    %767 = vmatpush.msra.mxu0 %v98
    %768 = vmatpush.msra.mxu0 %v95
    %769 = vmatpush.msra.mxu0 %v92
    %770 = vmatpush.msra.mxu0 %v89
    %771 = vmatpush.msra.mxu0 %v86
    %772 = vmatpush.msra.mxu0 %v83
    %773 = vmatmul.f32.gmra.mxu0 %v756
    %v774 = vpop.f32.mrf.mxu0
    %v775 = vadd.f32 %v133, %v774
    %776 = vdwg.mxu0
    %777 = vmatpush.msra.mxu0 %v129
    %778 = vmatpush.msra.mxu0 %v126
    %779 = vmatpush.msra.mxu0 %v123
    %780 = vmatpush.msra.mxu0 %v120
    %781 = vmatpush.msra.mxu0 %v117
    %782 = vmatpush.msra.mxu0 %v114
    %783 = vmatpush.msra.mxu0 %v111
    %784 = vmatpush.msra.mxu0 %v108
    %785 = vmatpush.msra.mxu0 %v105
    %786 = vmatpush.msra.mxu0 %v102
    %787 = vmatpush.msra.mxu0 %v99
    %788 = vmatpush.msra.mxu0 %v96
    %789 = vmatpush.msra.mxu0 %v93
    %790 = vmatpush.msra.mxu0 %v90
    %791 = vmatpush.msra.mxu0 %v87
    %792 = vmatpush.msra.mxu0 %v84
    %793 = vmatmul.f32.gmra.mxu0 %v756
    %v794 = vpop.f32.mrf.mxu0
    %v795 = vadd.f32 %v134, %v794
    %796 = vdwg.mxu0
    %797 = vmatpush.msra.mxu0 %v130
    %798 = vmatpush.msra.mxu0 %v127
    %799 = vmatpush.msra.mxu0 %v124
    %800 = vmatpush.msra.mxu0 %v121
    %801 = vmatpush.msra.mxu0 %v118
    %802 = vmatpush.msra.mxu0 %v115
    %803 = vmatpush.msra.mxu0 %v112
    %804 = vmatpush.msra.mxu0 %v109
    %805 = vmatpush.msra.mxu0 %v106
    %806 = vmatpush.msra.mxu0 %v103
    %807 = vmatpush.msra.mxu0 %v100
    %808 = vmatpush.msra.mxu0 %v97
    %809 = vmatpush.msra.mxu0 %v94
    %810 = vmatpush.msra.mxu0 %v91
    %811 = vmatpush.msra.mxu0 %v88
    %812 = vmatpush.msra.mxu0 %v85
    %813 = vmatmul.f32.gmra.mxu0 %v756
    %v814 = vpop.f32.mrf.mxu0
    %v815 = vadd.f32 %v135, %v814
    %816 = vdwg.mxu0
    %v817 = vpack.c.bf16 %v753, %v753
    %818 = vmatpush.bf16.msra.mxu0 %v334
    %819 = vmatpush.bf16.msra.mxu0 %v331
    %820 = vmatpush.bf16.msra.mxu0 %v328
    %821 = vmatpush.bf16.msra.mxu0 %v325
    %822 = vmatpush.bf16.msra.mxu0 %v322
    %823 = vmatpush.bf16.msra.mxu0 %v319
    %824 = vmatpush.bf16.msra.mxu0 %v316
    %825 = vmatpush.bf16.msra.mxu0 %v313
    %826 = vmatmul.bf16.gmra.mxu0 %v817
    %v827 = vpop.f32.mrf.mxu0
    %v828 = vadd.f32 %v362, %v827
    %v829 = vpop.f32.mrf.mxu0
    %830 = vdwg.mxu0
    %831 = vmatpush.bf16.msra.mxu0 %v335
    %832 = vmatpush.bf16.msra.mxu0 %v332
    %833 = vmatpush.bf16.msra.mxu0 %v329
    %834 = vmatpush.bf16.msra.mxu0 %v326
    %835 = vmatpush.bf16.msra.mxu0 %v323
    %836 = vmatpush.bf16.msra.mxu0 %v320
    %837 = vmatpush.bf16.msra.mxu0 %v317
    %838 = vmatpush.bf16.msra.mxu0 %v314
    %839 = vmatmul.bf16.gmra.mxu0 %v817
    %v840 = vpop.f32.mrf.mxu0
    %v841 = vadd.f32 %v363, %v840
    %v842 = vpop.f32.mrf.mxu0
    %843 = vdwg.mxu0
    %844 = vmatpush.bf16.msra.mxu0 %v336
    %845 = vmatpush.bf16.msra.mxu0 %v333
    %846 = vmatpush.bf16.msra.mxu0 %v330
    %847 = vmatpush.bf16.msra.mxu0 %v327
    %848 = vmatpush.bf16.msra.mxu0 %v324
    %849 = vmatpush.bf16.msra.mxu0 %v321
    %850 = vmatpush.bf16.msra.mxu0 %v318
    %851 = vmatpush.bf16.msra.mxu0 %v315
    %852 = vmatmul.bf16.gmra.mxu0 %v817
    %v853 = vpop.f32.mrf.mxu0
    %v854 = vadd.f32 %v364, %v853
    %v855 = vpop.f32.mrf.mxu0
    %856 = vdwg.mxu0
    %v857 = vadd.f32 %v775, %v828
    %v858 = vxor.u32 %v857, 2147483648
    %v859 = vmul.f32 %v858, 1.442695
    %v860 = vpow.pop %v859
    %v861 = vadd.f32 %v860, 1.0
    %v862 = vrcp.pop %v861
    %v863 = vmul.f32 %v861, %v862
    %v864 = vsub.f32 1.0, %v863
    %v865 = vmul.f32 %v862, %v864
    %v866 = vadd.f32 %v862, %v865
    %vm867 = vweird.f32 %v861
    %vm868 = vweird.f32 %v862
    %vm869 = vmor %vm867, %vm868
    %v870 = vsel %vm869, %v862, %v866
    %v871 = vand.u32 2147483647, %v861
    %vm872 = vcmp.eq.f32.partialorder %v871, 8.507059e+37
    %v873 = vand.u32 %v861, 2147483648
    %v874 = vor.u32 1.1754944e-38, %v873
    %v875 = vsel %vm872, %v874, %v870
    %v876 = vmul.f32 1.0, %v875
    %v877 = vadd.f32 %v795, %v841
    %v878 = vxor.u32 %v877, 2147483648
    %v879 = vmul.f32 %v878, 1.442695
    %v880 = vpow.pop %v879
    %v881 = vadd.f32 %v880, 1.0
    %v882 = vrcp.pop %v881
    %v883 = vmul.f32 %v881, %v882
    %v884 = vsub.f32 1.0, %v883
    %v885 = vmul.f32 %v882, %v884
    %v886 = vadd.f32 %v882, %v885
    %vm887 = vweird.f32 %v881
    %vm888 = vweird.f32 %v882
    %vm889 = vmor %vm887, %vm888
    %v890 = vsel %vm889, %v882, %v886
    %v891 = vand.u32 2147483647, %v881
    %vm892 = vcmp.eq.f32.partialorder %v891, 8.507059e+37
    %v893 = vand.u32 %v881, 2147483648
    %v894 = vor.u32 1.1754944e-38, %v893
    %v895 = vsel %vm892, %v894, %v890
    %v896 = vmul.f32 1.0, %v895
    %v897 = vmul.f32 %v876, %v854
    %v898 = vadd.f32 %v815, %v897
    %v899 = vtanh.pop %v898
    %v900 = vsub.f32 1.0, %v896
    %v901 = vmul.f32 %v900, %v899
    %v902 = vmul.f32 %v896, %v753
    %v903 = vadd.f32 %v901, %v902
    %s904 = sld [smem:[#allocation3 + $0x4]]
    %s905 = scalar_lea.vmem [#allocation4], %s904
    %v906 = vld [vmem:[%s905] sm:$0x1]
    %907 = vmatpush.msra.mxu0 %v128
    %908 = vmatpush.msra.mxu0 %v125
    %909 = vmatpush.msra.mxu0 %v122
    %910 = vmatpush.msra.mxu0 %v119
    %911 = vmatpush.msra.mxu0 %v116
    %912 = vmatpush.msra.mxu0 %v113
    %913 = vmatpush.msra.mxu0 %v110
    %914 = vmatpush.msra.mxu0 %v107
    %915 = vmatpush.msra.mxu0 %v104
    %916 = vmatpush.msra.mxu0 %v101
    %917 = vmatpush.msra.mxu0 %v98
    %918 = vmatpush.msra.mxu0 %v95
    %919 = vmatpush.msra.mxu0 %v92
    %920 = vmatpush.msra.mxu0 %v89
    %921 = vmatpush.msra.mxu0 %v86
    %922 = vmatpush.msra.mxu0 %v83
    %923 = vmatmul.f32.gmra.mxu0 %v906
    %v924 = vpop.f32.mrf.mxu0
    %v925 = vadd.f32 %v133, %v924
    %926 = vdwg.mxu0
    %927 = vmatpush.msra.mxu0 %v129
    %928 = vmatpush.msra.mxu0 %v126
    %929 = vmatpush.msra.mxu0 %v123
    %930 = vmatpush.msra.mxu0 %v120
    %931 = vmatpush.msra.mxu0 %v117
    %932 = vmatpush.msra.mxu0 %v114
    %933 = vmatpush.msra.mxu0 %v111
    %934 = vmatpush.msra.mxu0 %v108
    %935 = vmatpush.msra.mxu0 %v105
    %936 = vmatpush.msra.mxu0 %v102
    %937 = vmatpush.msra.mxu0 %v99
    %938 = vmatpush.msra.mxu0 %v96
    %939 = vmatpush.msra.mxu0 %v93
    %940 = vmatpush.msra.mxu0 %v90
    %941 = vmatpush.msra.mxu0 %v87
    %942 = vmatpush.msra.mxu0 %v84
    %943 = vmatmul.f32.gmra.mxu0 %v906
    %v944 = vpop.f32.mrf.mxu0
    %v945 = vadd.f32 %v134, %v944
    %946 = vdwg.mxu0
    %947 = vmatpush.msra.mxu0 %v130
    %948 = vmatpush.msra.mxu0 %v127
    %949 = vmatpush.msra.mxu0 %v124
    %950 = vmatpush.msra.mxu0 %v121
    %951 = vmatpush.msra.mxu0 %v118
    %952 = vmatpush.msra.mxu0 %v115
    %953 = vmatpush.msra.mxu0 %v112
    %954 = vmatpush.msra.mxu0 %v109
    %955 = vmatpush.msra.mxu0 %v106
    %956 = vmatpush.msra.mxu0 %v103
    %957 = vmatpush.msra.mxu0 %v100
    %958 = vmatpush.msra.mxu0 %v97
    %959 = vmatpush.msra.mxu0 %v94
    %960 = vmatpush.msra.mxu0 %v91
    %961 = vmatpush.msra.mxu0 %v88
    %962 = vmatpush.msra.mxu0 %v85
    %963 = vmatmul.f32.gmra.mxu0 %v906
    %v964 = vpop.f32.mrf.mxu0
    %v965 = vadd.f32 %v135, %v964
    %966 = vdwg.mxu0
    %v967 = vpack.c.bf16 %v903, %v903
    %968 = vmatpush.bf16.msra.mxu0 %v334
    %969 = vmatpush.bf16.msra.mxu0 %v331
    %970 = vmatpush.bf16.msra.mxu0 %v328
    %971 = vmatpush.bf16.msra.mxu0 %v325
    %972 = vmatpush.bf16.msra.mxu0 %v322
    %973 = vmatpush.bf16.msra.mxu0 %v319
    %974 = vmatpush.bf16.msra.mxu0 %v316
    %975 = vmatpush.bf16.msra.mxu0 %v313
    %976 = vmatmul.bf16.gmra.mxu0 %v967
    %v977 = vpop.f32.mrf.mxu0
    %v978 = vadd.f32 %v362, %v977
    %v979 = vpop.f32.mrf.mxu0
    %980 = vdwg.mxu0
    %981 = vmatpush.bf16.msra.mxu0 %v335
    %982 = vmatpush.bf16.msra.mxu0 %v332
    %983 = vmatpush.bf16.msra.mxu0 %v329
    %984 = vmatpush.bf16.msra.mxu0 %v326
    %985 = vmatpush.bf16.msra.mxu0 %v323
    %986 = vmatpush.bf16.msra.mxu0 %v320
    %987 = vmatpush.bf16.msra.mxu0 %v317
    %988 = vmatpush.bf16.msra.mxu0 %v314
    %989 = vmatmul.bf16.gmra.mxu0 %v967
    %v990 = vpop.f32.mrf.mxu0
    %v991 = vadd.f32 %v363, %v990
    %v992 = vpop.f32.mrf.mxu0
    %993 = vdwg.mxu0
    %994 = vmatpush.bf16.msra.mxu0 %v336
    %995 = vmatpush.bf16.msra.mxu0 %v333
    %996 = vmatpush.bf16.msra.mxu0 %v330
    %997 = vmatpush.bf16.msra.mxu0 %v327
    %998 = vmatpush.bf16.msra.mxu0 %v324
    %999 = vmatpush.bf16.msra.mxu0 %v321
    %1000 = vmatpush.bf16.msra.mxu0 %v318
    %1001 = vmatpush.bf16.msra.mxu0 %v315
    %1002 = vmatmul.bf16.gmra.mxu0 %v967
    %v1003 = vpop.f32.mrf.mxu0
    %v1004 = vadd.f32 %v364, %v1003
    %v1005 = vpop.f32.mrf.mxu0
    %1006 = vdwg.mxu0
    %v1007 = vadd.f32 %v925, %v978
    %v1008 = vxor.u32 %v1007, 2147483648
    %v1009 = vmul.f32 %v1008, 1.442695
    %v1010 = vpow.pop %v1009
    %v1011 = vadd.f32 %v1010, 1.0
    %v1012 = vrcp.pop %v1011
    %v1013 = vmul.f32 %v1011, %v1012
    %v1014 = vsub.f32 1.0, %v1013
    %v1015 = vmul.f32 %v1012, %v1014
    %v1016 = vadd.f32 %v1012, %v1015
    %vm1017 = vweird.f32 %v1011
    %vm1018 = vweird.f32 %v1012
    %vm1019 = vmor %vm1017, %vm1018
    %v1020 = vsel %vm1019, %v1012, %v1016
    %v1021 = vand.u32 2147483647, %v1011
    %vm1022 = vcmp.eq.f32.partialorder %v1021, 8.507059e+37
    %v1023 = vand.u32 %v1011, 2147483648
    %v1024 = vor.u32 1.1754944e-38, %v1023
    %v1025 = vsel %vm1022, %v1024, %v1020
    %v1026 = vmul.f32 1.0, %v1025
    %v1027 = vadd.f32 %v945, %v991
    %v1028 = vxor.u32 %v1027, 2147483648
    %v1029 = vmul.f32 %v1028, 1.442695
    %v1030 = vpow.pop %v1029
    %v1031 = vadd.f32 %v1030, 1.0
    %v1032 = vrcp.pop %v1031
    %v1033 = vmul.f32 %v1031, %v1032
    %v1034 = vsub.f32 1.0, %v1033
    %v1035 = vmul.f32 %v1032, %v1034
    %v1036 = vadd.f32 %v1032, %v1035
    %vm1037 = vweird.f32 %v1031
    %vm1038 = vweird.f32 %v1032
    %vm1039 = vmor %vm1037, %vm1038
    %v1040 = vsel %vm1039, %v1032, %v1036
    %v1041 = vand.u32 2147483647, %v1031
    %vm1042 = vcmp.eq.f32.partialorder %v1041, 8.507059e+37
    %v1043 = vand.u32 %v1031, 2147483648
    %v1044 = vor.u32 1.1754944e-38, %v1043
    %v1045 = vsel %vm1042, %v1044, %v1040
    %v1046 = vmul.f32 1.0, %v1045
    %v1047 = vmul.f32 %v1026, %v1004
    %v1048 = vadd.f32 %v965, %v1047
    %v1049 = vtanh.pop %v1048
    %v1050 = vsub.f32 1.0, %v1046
    %v1051 = vmul.f32 %v1050, %v1049
    %v1052 = vmul.f32 %v1046, %v903
    %v1053 = vadd.f32 %v1051, %v1052
    %s1054 = sld [smem:[#allocation3 + $0x5]]
    %s1055 = scalar_lea.vmem [#allocation4], %s1054
    %v1056 = vld [vmem:[%s1055] sm:$0x1]
    %1057 = vmatpush.msra.mxu0 %v128
    %1058 = vmatpush.msra.mxu0 %v125
    %1059 = vmatpush.msra.mxu0 %v122
    %1060 = vmatpush.msra.mxu0 %v119
    %1061 = vmatpush.msra.mxu0 %v116
    %1062 = vmatpush.msra.mxu0 %v113
    %1063 = vmatpush.msra.mxu0 %v110
    %1064 = vmatpush.msra.mxu0 %v107
    %1065 = vmatpush.msra.mxu0 %v104
    %1066 = vmatpush.msra.mxu0 %v101
    %1067 = vmatpush.msra.mxu0 %v98
    %1068 = vmatpush.msra.mxu0 %v95
    %1069 = vmatpush.msra.mxu0 %v92
    %1070 = vmatpush.msra.mxu0 %v89
    %1071 = vmatpush.msra.mxu0 %v86
    %1072 = vmatpush.msra.mxu0 %v83
    %1073 = vmatmul.f32.gmra.mxu0 %v1056
    %v1074 = vpop.f32.mrf.mxu0
    %v1075 = vadd.f32 %v133, %v1074
    %1076 = vdwg.mxu0
    %1077 = vmatpush.msra.mxu0 %v129
    %1078 = vmatpush.msra.mxu0 %v126
    %1079 = vmatpush.msra.mxu0 %v123
    %1080 = vmatpush.msra.mxu0 %v120
    %1081 = vmatpush.msra.mxu0 %v117
    %1082 = vmatpush.msra.mxu0 %v114
    %1083 = vmatpush.msra.mxu0 %v111
    %1084 = vmatpush.msra.mxu0 %v108
    %1085 = vmatpush.msra.mxu0 %v105
    %1086 = vmatpush.msra.mxu0 %v102
    %1087 = vmatpush.msra.mxu0 %v99
    %1088 = vmatpush.msra.mxu0 %v96
    %1089 = vmatpush.msra.mxu0 %v93
    %1090 = vmatpush.msra.mxu0 %v90
    %1091 = vmatpush.msra.mxu0 %v87
    %1092 = vmatpush.msra.mxu0 %v84
    %1093 = vmatmul.f32.gmra.mxu0 %v1056
    %v1094 = vpop.f32.mrf.mxu0
    %v1095 = vadd.f32 %v134, %v1094
    %1096 = vdwg.mxu0
    %1097 = vmatpush.msra.mxu0 %v130
    %1098 = vmatpush.msra.mxu0 %v127
    %1099 = vmatpush.msra.mxu0 %v124
    %1100 = vmatpush.msra.mxu0 %v121
    %1101 = vmatpush.msra.mxu0 %v118
    %1102 = vmatpush.msra.mxu0 %v115
    %1103 = vmatpush.msra.mxu0 %v112
    %1104 = vmatpush.msra.mxu0 %v109
    %1105 = vmatpush.msra.mxu0 %v106
    %1106 = vmatpush.msra.mxu0 %v103
    %1107 = vmatpush.msra.mxu0 %v100
    %1108 = vmatpush.msra.mxu0 %v97
    %1109 = vmatpush.msra.mxu0 %v94
    %1110 = vmatpush.msra.mxu0 %v91
    %1111 = vmatpush.msra.mxu0 %v88
    %1112 = vmatpush.msra.mxu0 %v85
    %1113 = vmatmul.f32.gmra.mxu0 %v1056
    %v1114 = vpop.f32.mrf.mxu0
    %v1115 = vadd.f32 %v135, %v1114
    %1116 = vdwg.mxu0
    %v1117 = vpack.c.bf16 %v1053, %v1053
    %1118 = vmatpush.bf16.msra.mxu0 %v334
    %1119 = vmatpush.bf16.msra.mxu0 %v331
    %1120 = vmatpush.bf16.msra.mxu0 %v328
    %1121 = vmatpush.bf16.msra.mxu0 %v325
    %1122 = vmatpush.bf16.msra.mxu0 %v322
    %1123 = vmatpush.bf16.msra.mxu0 %v319
    %1124 = vmatpush.bf16.msra.mxu0 %v316
    %1125 = vmatpush.bf16.msra.mxu0 %v313
    %1126 = vmatmul.bf16.gmra.mxu0 %v1117
    %v1127 = vpop.f32.mrf.mxu0
    %v1128 = vadd.f32 %v362, %v1127
    %v1129 = vpop.f32.mrf.mxu0
    %1130 = vdwg.mxu0
    %1131 = vmatpush.bf16.msra.mxu0 %v335
    %1132 = vmatpush.bf16.msra.mxu0 %v332
    %1133 = vmatpush.bf16.msra.mxu0 %v329
    %1134 = vmatpush.bf16.msra.mxu0 %v326
    %1135 = vmatpush.bf16.msra.mxu0 %v323
    %1136 = vmatpush.bf16.msra.mxu0 %v320
    %1137 = vmatpush.bf16.msra.mxu0 %v317
    %1138 = vmatpush.bf16.msra.mxu0 %v314
    %1139 = vmatmul.bf16.gmra.mxu0 %v1117
    %v1140 = vpop.f32.mrf.mxu0
    %v1141 = vadd.f32 %v363, %v1140
    %v1142 = vpop.f32.mrf.mxu0
    %1143 = vdwg.mxu0
    %1144 = vmatpush.bf16.msra.mxu0 %v336
    %1145 = vmatpush.bf16.msra.mxu0 %v333
    %1146 = vmatpush.bf16.msra.mxu0 %v330
    %1147 = vmatpush.bf16.msra.mxu0 %v327
    %1148 = vmatpush.bf16.msra.mxu0 %v324
    %1149 = vmatpush.bf16.msra.mxu0 %v321
    %1150 = vmatpush.bf16.msra.mxu0 %v318
    %1151 = vmatpush.bf16.msra.mxu0 %v315
    %1152 = vmatmul.bf16.gmra.mxu0 %v1117
    %v1153 = vpop.f32.mrf.mxu0
    %v1154 = vadd.f32 %v364, %v1153
    %v1155 = vpop.f32.mrf.mxu0
    %1156 = vdwg.mxu0
    %v1157 = vadd.f32 %v1075, %v1128
    %v1158 = vxor.u32 %v1157, 2147483648
    %v1159 = vmul.f32 %v1158, 1.442695
    %v1160 = vpow.pop %v1159
    %v1161 = vadd.f32 %v1160, 1.0
    %v1162 = vrcp.pop %v1161
    %v1163 = vmul.f32 %v1161, %v1162
    %v1164 = vsub.f32 1.0, %v1163
    %v1165 = vmul.f32 %v1162, %v1164
    %v1166 = vadd.f32 %v1162, %v1165
    %vm1167 = vweird.f32 %v1161
    %vm1168 = vweird.f32 %v1162
    %vm1169 = vmor %vm1167, %vm1168
    %v1170 = vsel %vm1169, %v1162, %v1166
    %v1171 = vand.u32 2147483647, %v1161
    %vm1172 = vcmp.eq.f32.partialorder %v1171, 8.507059e+37
    %v1173 = vand.u32 %v1161, 2147483648
    %v1174 = vor.u32 1.1754944e-38, %v1173
    %v1175 = vsel %vm1172, %v1174, %v1170
    %v1176 = vmul.f32 1.0, %v1175
    %v1177 = vadd.f32 %v1095, %v1141
    %v1178 = vxor.u32 %v1177, 2147483648
    %v1179 = vmul.f32 %v1178, 1.442695
    %v1180 = vpow.pop %v1179
    %v1181 = vadd.f32 %v1180, 1.0
    %v1182 = vrcp.pop %v1181
    %v1183 = vmul.f32 %v1181, %v1182
    %v1184 = vsub.f32 1.0, %v1183
    %v1185 = vmul.f32 %v1182, %v1184
    %v1186 = vadd.f32 %v1182, %v1185
    %vm1187 = vweird.f32 %v1181
    %vm1188 = vweird.f32 %v1182
    %vm1189 = vmor %vm1187, %vm1188
    %v1190 = vsel %vm1189, %v1182, %v1186
    %v1191 = vand.u32 2147483647, %v1181
    %vm1192 = vcmp.eq.f32.partialorder %v1191, 8.507059e+37
    %v1193 = vand.u32 %v1181, 2147483648
    %v1194 = vor.u32 1.1754944e-38, %v1193
    %v1195 = vsel %vm1192, %v1194, %v1190
    %v1196 = vmul.f32 1.0, %v1195
    %v1197 = vmul.f32 %v1176, %v1154
    %v1198 = vadd.f32 %v1115, %v1197
    %v1199 = vtanh.pop %v1198
    %v1200 = vsub.f32 1.0, %v1196
    %v1201 = vmul.f32 %v1200, %v1199
    %v1202 = vmul.f32 %v1196, %v1053
    %v1203 = vadd.f32 %v1201, %v1202
    %s1204 = sld [smem:[#allocation3 + $0x6]]
    %s1205 = scalar_lea.vmem [#allocation4], %s1204
    %v1206 = vld [vmem:[%s1205] sm:$0x1]
    %1207 = vmatpush.msra.mxu0 %v128
    %1208 = vmatpush.msra.mxu0 %v125
    %1209 = vmatpush.msra.mxu0 %v122
    %1210 = vmatpush.msra.mxu0 %v119
    %1211 = vmatpush.msra.mxu0 %v116
    %1212 = vmatpush.msra.mxu0 %v113
    %1213 = vmatpush.msra.mxu0 %v110
    %1214 = vmatpush.msra.mxu0 %v107
    %1215 = vmatpush.msra.mxu0 %v104
    %1216 = vmatpush.msra.mxu0 %v101
    %1217 = vmatpush.msra.mxu0 %v98
    %1218 = vmatpush.msra.mxu0 %v95
    %1219 = vmatpush.msra.mxu0 %v92
    %1220 = vmatpush.msra.mxu0 %v89
    %1221 = vmatpush.msra.mxu0 %v86
    %1222 = vmatpush.msra.mxu0 %v83
    %1223 = vmatmul.f32.gmra.mxu0 %v1206
    %v1224 = vpop.f32.mrf.mxu0
    %v1225 = vadd.f32 %v133, %v1224
    %1226 = vdwg.mxu0
    %1227 = vmatpush.msra.mxu0 %v129
    %1228 = vmatpush.msra.mxu0 %v126
    %1229 = vmatpush.msra.mxu0 %v123
    %1230 = vmatpush.msra.mxu0 %v120
    %1231 = vmatpush.msra.mxu0 %v117
    %1232 = vmatpush.msra.mxu0 %v114
    %1233 = vmatpush.msra.mxu0 %v111
    %1234 = vmatpush.msra.mxu0 %v108
    %1235 = vmatpush.msra.mxu0 %v105
    %1236 = vmatpush.msra.mxu0 %v102
    %1237 = vmatpush.msra.mxu0 %v99
    %1238 = vmatpush.msra.mxu0 %v96
    %1239 = vmatpush.msra.mxu0 %v93
    %1240 = vmatpush.msra.mxu0 %v90
    %1241 = vmatpush.msra.mxu0 %v87
    %1242 = vmatpush.msra.mxu0 %v84
    %1243 = vmatmul.f32.gmra.mxu0 %v1206
    %v1244 = vpop.f32.mrf.mxu0
    %v1245 = vadd.f32 %v134, %v1244
    %1246 = vdwg.mxu0
    %1247 = vmatpush.msra.mxu0 %v130
    %1248 = vmatpush.msra.mxu0 %v127
    %1249 = vmatpush.msra.mxu0 %v124
    %1250 = vmatpush.msra.mxu0 %v121
    %1251 = vmatpush.msra.mxu0 %v118
    %1252 = vmatpush.msra.mxu0 %v115
    %1253 = vmatpush.msra.mxu0 %v112
    %1254 = vmatpush.msra.mxu0 %v109
    %1255 = vmatpush.msra.mxu0 %v106
    %1256 = vmatpush.msra.mxu0 %v103
    %1257 = vmatpush.msra.mxu0 %v100
    %1258 = vmatpush.msra.mxu0 %v97
    %1259 = vmatpush.msra.mxu0 %v94
    %1260 = vmatpush.msra.mxu0 %v91
    %1261 = vmatpush.msra.mxu0 %v88
    %1262 = vmatpush.msra.mxu0 %v85
    %1263 = vmatmul.f32.gmra.mxu0 %v1206
    %v1264 = vpop.f32.mrf.mxu0
    %v1265 = vadd.f32 %v135, %v1264
    %1266 = vdwg.mxu0
    %v1267 = vpack.c.bf16 %v1203, %v1203
    %1268 = vmatpush.bf16.msra.mxu0 %v334
    %1269 = vmatpush.bf16.msra.mxu0 %v331
    %1270 = vmatpush.bf16.msra.mxu0 %v328
    %1271 = vmatpush.bf16.msra.mxu0 %v325
    %1272 = vmatpush.bf16.msra.mxu0 %v322
    %1273 = vmatpush.bf16.msra.mxu0 %v319
    %1274 = vmatpush.bf16.msra.mxu0 %v316
    %1275 = vmatpush.bf16.msra.mxu0 %v313
    %1276 = vmatmul.bf16.gmra.mxu0 %v1267
    %v1277 = vpop.f32.mrf.mxu0
    %v1278 = vadd.f32 %v362, %v1277
    %v1279 = vpop.f32.mrf.mxu0
    %1280 = vdwg.mxu0
    %1281 = vmatpush.bf16.msra.mxu0 %v335
    %1282 = vmatpush.bf16.msra.mxu0 %v332
    %1283 = vmatpush.bf16.msra.mxu0 %v329
    %1284 = vmatpush.bf16.msra.mxu0 %v326
    %1285 = vmatpush.bf16.msra.mxu0 %v323
    %1286 = vmatpush.bf16.msra.mxu0 %v320
    %1287 = vmatpush.bf16.msra.mxu0 %v317
    %1288 = vmatpush.bf16.msra.mxu0 %v314
    %1289 = vmatmul.bf16.gmra.mxu0 %v1267
    %v1290 = vpop.f32.mrf.mxu0
    %v1291 = vadd.f32 %v363, %v1290
    %v1292 = vpop.f32.mrf.mxu0
    %1293 = vdwg.mxu0
    %1294 = vmatpush.bf16.msra.mxu0 %v336
    %1295 = vmatpush.bf16.msra.mxu0 %v333
    %1296 = vmatpush.bf16.msra.mxu0 %v330
    %1297 = vmatpush.bf16.msra.mxu0 %v327
    %1298 = vmatpush.bf16.msra.mxu0 %v324
    %1299 = vmatpush.bf16.msra.mxu0 %v321
    %1300 = vmatpush.bf16.msra.mxu0 %v318
    %1301 = vmatpush.bf16.msra.mxu0 %v315
    %1302 = vmatmul.bf16.gmra.mxu0 %v1267
    %v1303 = vpop.f32.mrf.mxu0
    %v1304 = vadd.f32 %v364, %v1303
    %v1305 = vpop.f32.mrf.mxu0
    %1306 = vdwg.mxu0
    %v1307 = vadd.f32 %v1225, %v1278
    %v1308 = vxor.u32 %v1307, 2147483648
    %v1309 = vmul.f32 %v1308, 1.442695
    %v1310 = vpow.pop %v1309
    %v1311 = vadd.f32 %v1310, 1.0
    %v1312 = vrcp.pop %v1311
    %v1313 = vmul.f32 %v1311, %v1312
    %v1314 = vsub.f32 1.0, %v1313
    %v1315 = vmul.f32 %v1312, %v1314
    %v1316 = vadd.f32 %v1312, %v1315
    %vm1317 = vweird.f32 %v1311
    %vm1318 = vweird.f32 %v1312
    %vm1319 = vmor %vm1317, %vm1318
    %v1320 = vsel %vm1319, %v1312, %v1316
    %v1321 = vand.u32 2147483647, %v1311
    %vm1322 = vcmp.eq.f32.partialorder %v1321, 8.507059e+37
    %v1323 = vand.u32 %v1311, 2147483648
    %v1324 = vor.u32 1.1754944e-38, %v1323
    %v1325 = vsel %vm1322, %v1324, %v1320
    %v1326 = vmul.f32 1.0, %v1325
    %v1327 = vadd.f32 %v1245, %v1291
    %v1328 = vxor.u32 %v1327, 2147483648
    %v1329 = vmul.f32 %v1328, 1.442695
    %v1330 = vpow.pop %v1329
    %v1331 = vadd.f32 %v1330, 1.0
    %v1332 = vrcp.pop %v1331
    %v1333 = vmul.f32 %v1331, %v1332
    %v1334 = vsub.f32 1.0, %v1333
    %v1335 = vmul.f32 %v1332, %v1334
    %v1336 = vadd.f32 %v1332, %v1335
    %vm1337 = vweird.f32 %v1331
    %vm1338 = vweird.f32 %v1332
    %vm1339 = vmor %vm1337, %vm1338
    %v1340 = vsel %vm1339, %v1332, %v1336
    %v1341 = vand.u32 2147483647, %v1331
    %vm1342 = vcmp.eq.f32.partialorder %v1341, 8.507059e+37
    %v1343 = vand.u32 %v1331, 2147483648
    %v1344 = vor.u32 1.1754944e-38, %v1343
    %v1345 = vsel %vm1342, %v1344, %v1340
    %v1346 = vmul.f32 1.0, %v1345
    %v1347 = vmul.f32 %v1326, %v1304
    %v1348 = vadd.f32 %v1265, %v1347
    %v1349 = vtanh.pop %v1348
    %v1350 = vsub.f32 1.0, %v1346
    %v1351 = vmul.f32 %v1350, %v1349
    %v1352 = vmul.f32 %v1346, %v1203
    %v1353 = vadd.f32 %v1351, %v1352
    %s1354 = sld [smem:[#allocation3 + $0x7]]
    %s1355 = scalar_lea.vmem [#allocation4], %s1354
    %v1356 = vld [vmem:[%s1355] sm:$0x1]
    %1357 = vmatpush.msra.mxu0 %v128
    %1358 = vmatpush.msra.mxu0 %v125
    %1359 = vmatpush.msra.mxu0 %v122
    %1360 = vmatpush.msra.mxu0 %v119
    %1361 = vmatpush.msra.mxu0 %v116
    %1362 = vmatpush.msra.mxu0 %v113
    %1363 = vmatpush.msra.mxu0 %v110
    %1364 = vmatpush.msra.mxu0 %v107
    %1365 = vmatpush.msra.mxu0 %v104
    %1366 = vmatpush.msra.mxu0 %v101
    %1367 = vmatpush.msra.mxu0 %v98
    %1368 = vmatpush.msra.mxu0 %v95
    %1369 = vmatpush.msra.mxu0 %v92
    %1370 = vmatpush.msra.mxu0 %v89
    %1371 = vmatpush.msra.mxu0 %v86
    %1372 = vmatpush.msra.mxu0 %v83
    %1373 = vmatmul.f32.gmra.mxu0 %v1356
    %v1374 = vpop.f32.mrf.mxu0
    %v1375 = vadd.f32 %v133, %v1374
    %1376 = vdwg.mxu0
    %1377 = vmatpush.msra.mxu0 %v129
    %1378 = vmatpush.msra.mxu0 %v126
    %1379 = vmatpush.msra.mxu0 %v123
    %1380 = vmatpush.msra.mxu0 %v120
    %1381 = vmatpush.msra.mxu0 %v117
    %1382 = vmatpush.msra.mxu0 %v114
    %1383 = vmatpush.msra.mxu0 %v111
    %1384 = vmatpush.msra.mxu0 %v108
    %1385 = vmatpush.msra.mxu0 %v105
    %1386 = vmatpush.msra.mxu0 %v102
    %1387 = vmatpush.msra.mxu0 %v99
    %1388 = vmatpush.msra.mxu0 %v96
    %1389 = vmatpush.msra.mxu0 %v93
    %1390 = vmatpush.msra.mxu0 %v90
    %1391 = vmatpush.msra.mxu0 %v87
    %1392 = vmatpush.msra.mxu0 %v84
    %1393 = vmatmul.f32.gmra.mxu0 %v1356
    %v1394 = vpop.f32.mrf.mxu0
    %v1395 = vadd.f32 %v134, %v1394
    %1396 = vdwg.mxu0
    %1397 = vmatpush.msra.mxu0 %v130
    %1398 = vmatpush.msra.mxu0 %v127
    %1399 = vmatpush.msra.mxu0 %v124
    %1400 = vmatpush.msra.mxu0 %v121
    %1401 = vmatpush.msra.mxu0 %v118
    %1402 = vmatpush.msra.mxu0 %v115
    %1403 = vmatpush.msra.mxu0 %v112
    %1404 = vmatpush.msra.mxu0 %v109
    %1405 = vmatpush.msra.mxu0 %v106
    %1406 = vmatpush.msra.mxu0 %v103
    %1407 = vmatpush.msra.mxu0 %v100
    %1408 = vmatpush.msra.mxu0 %v97
    %1409 = vmatpush.msra.mxu0 %v94
    %1410 = vmatpush.msra.mxu0 %v91
    %1411 = vmatpush.msra.mxu0 %v88
    %1412 = vmatpush.msra.mxu0 %v85
    %1413 = vmatmul.f32.gmra.mxu0 %v1356
    %v1414 = vpop.f32.mrf.mxu0
    %v1415 = vadd.f32 %v135, %v1414
    %1416 = vdwg.mxu0
    %v1417 = vpack.c.bf16 %v1353, %v1353
    %1418 = vmatpush.bf16.msra.mxu0 %v334
    %1419 = vmatpush.bf16.msra.mxu0 %v331
    %1420 = vmatpush.bf16.msra.mxu0 %v328
    %1421 = vmatpush.bf16.msra.mxu0 %v325
    %1422 = vmatpush.bf16.msra.mxu0 %v322
    %1423 = vmatpush.bf16.msra.mxu0 %v319
    %1424 = vmatpush.bf16.msra.mxu0 %v316
    %1425 = vmatpush.bf16.msra.mxu0 %v313
    %1426 = vmatmul.bf16.gmra.mxu0 %v1417
    %v1427 = vpop.f32.mrf.mxu0
    %v1428 = vadd.f32 %v362, %v1427
    %v1429 = vpop.f32.mrf.mxu0
    %1430 = vdwg.mxu0
    %1431 = vmatpush.bf16.msra.mxu0 %v335
    %1432 = vmatpush.bf16.msra.mxu0 %v332
    %1433 = vmatpush.bf16.msra.mxu0 %v329
    %1434 = vmatpush.bf16.msra.mxu0 %v326
    %1435 = vmatpush.bf16.msra.mxu0 %v323
    %1436 = vmatpush.bf16.msra.mxu0 %v320
    %1437 = vmatpush.bf16.msra.mxu0 %v317
    %1438 = vmatpush.bf16.msra.mxu0 %v314
    %1439 = vmatmul.bf16.gmra.mxu0 %v1417
    %v1440 = vpop.f32.mrf.mxu0
    %v1441 = vadd.f32 %v363, %v1440
    %v1442 = vpop.f32.mrf.mxu0
    %1443 = vdwg.mxu0
    %1444 = vmatpush.bf16.msra.mxu0 %v336
    %1445 = vmatpush.bf16.msra.mxu0 %v333
    %1446 = vmatpush.bf16.msra.mxu0 %v330
    %1447 = vmatpush.bf16.msra.mxu0 %v327
    %1448 = vmatpush.bf16.msra.mxu0 %v324
    %1449 = vmatpush.bf16.msra.mxu0 %v321
    %1450 = vmatpush.bf16.msra.mxu0 %v318
    %1451 = vmatpush.bf16.msra.mxu0 %v315
    %1452 = vmatmul.bf16.gmra.mxu0 %v1417
    %v1453 = vpop.f32.mrf.mxu0
    %v1454 = vadd.f32 %v364, %v1453
    %v1455 = vpop.f32.mrf.mxu0
    %1456 = vdwg.mxu0
    %v1457 = vadd.f32 %v1375, %v1428
    %v1458 = vxor.u32 %v1457, 2147483648
    %v1459 = vmul.f32 %v1458, 1.442695
    %v1460 = vpow.pop %v1459
    %v1461 = vadd.f32 %v1460, 1.0
    %v1462 = vrcp.pop %v1461
    %v1463 = vmul.f32 %v1461, %v1462
    %v1464 = vsub.f32 1.0, %v1463
    %v1465 = vmul.f32 %v1462, %v1464
    %v1466 = vadd.f32 %v1462, %v1465
    %vm1467 = vweird.f32 %v1461
    %vm1468 = vweird.f32 %v1462
    %vm1469 = vmor %vm1467, %vm1468
    %v1470 = vsel %vm1469, %v1462, %v1466
    %v1471 = vand.u32 2147483647, %v1461
    %vm1472 = vcmp.eq.f32.partialorder %v1471, 8.507059e+37
    %v1473 = vand.u32 %v1461, 2147483648
    %v1474 = vor.u32 1.1754944e-38, %v1473
    %v1475 = vsel %vm1472, %v1474, %v1470
    %v1476 = vmul.f32 1.0, %v1475
    %v1477 = vadd.f32 %v1395, %v1441
    %v1478 = vxor.u32 %v1477, 2147483648
    %v1479 = vmul.f32 %v1478, 1.442695
    %v1480 = vpow.pop %v1479
    %v1481 = vadd.f32 %v1480, 1.0
    %v1482 = vrcp.pop %v1481
    %v1483 = vmul.f32 %v1481, %v1482
    %v1484 = vsub.f32 1.0, %v1483
    %v1485 = vmul.f32 %v1482, %v1484
    %v1486 = vadd.f32 %v1482, %v1485
    %vm1487 = vweird.f32 %v1481
    %vm1488 = vweird.f32 %v1482
    %vm1489 = vmor %vm1487, %vm1488
    %v1490 = vsel %vm1489, %v1482, %v1486
    %v1491 = vand.u32 2147483647, %v1481
    %vm1492 = vcmp.eq.f32.partialorder %v1491, 8.507059e+37
    %v1493 = vand.u32 %v1481, 2147483648
    %v1494 = vor.u32 1.1754944e-38, %v1493
    %v1495 = vsel %vm1492, %v1494, %v1490
    %v1496 = vmul.f32 1.0, %v1495
    %v1497 = vmul.f32 %v1476, %v1454
    %v1498 = vadd.f32 %v1415, %v1497
    %v1499 = vtanh.pop %v1498
    %v1500 = vsub.f32 1.0, %v1496
    %v1501 = vmul.f32 %v1500, %v1499
    %v1502 = vmul.f32 %v1496, %v1353
    %v1503 = vadd.f32 %v1501, %v1502
    %v1505 = vrot.slane %v603, 7
    %v1508 = vrot.slane %v753, 6
    %v1511 = vrot.slane %v903, 5
    %v1514 = vrot.slane %v1053, 4
    %v1517 = vrot.slane %v1203, 3
    %v1520 = vrot.slane %v1353, 2
    %v1523 = vrot.slane %v1503, 1
    %vm1525 = vcmask 1040384
    %v1526 = vsel %vm1525, %v453, %v1505
    %vm1527 = vcmask 1041408
    %v1528 = vsel %vm1527, %v1526, %v1508
    %vm1529 = vcmask 1042432
    %v1530 = vsel %vm1529, %v1528, %v1511
    %vm1531 = vcmask 1043456
    %v1532 = vsel %vm1531, %v1530, %v1514
    %vm1533 = vcmask 1044480
    %v1534 = vsel %vm1533, %v1532, %v1517
    %vm1535 = vcmask 1045504
    %v1536 = vsel %vm1535, %v1534, %v1520
    %vm1537 = vcmask 1046528
    %v1538 = vsel %vm1537, %v1536, %v1523
    %1539 = vst [vmem:[%s7] sm:$0xff] %v1538
    // Predicated region
    $region38: #{encoder_forward_seq.1} parent=1 // pred_check
      _
    $region39: #{encoder_forward_seq.1} parent=1 // pred_check_branch
      %1541 = sbr.rel (0) target = $region41
    $region40: #{encoder_forward_seq.1} parent=1 // pred_region
      _
    $region41: #{encoder_forward_seq.1} parent=1 // pred_fallthru
      _
    // Predicated region
    $region42: #{encoder_forward_seq.1} parent=1 // pred_check
      _
    $region43: #{encoder_forward_seq.1} parent=1 // pred_check_branch
      %1543 = sbr.rel (0) target = $region45
    $region44: #{encoder_forward_seq.1} parent=1 // pred_region
      _
    $region45: #{encoder_forward_seq.1} parent=1 // pred_fallthru
      _
    %1544 = vsyncpa [#allocation5], 1
    %1545 = vsyncpa [#allocation7], 1

</llo_original>
